<compile_context>
chip_gen: v5e
topology: v5e:2x2
jax: 0.10.0
libtpu: 0.0.40
codegen_flags: <defaults>
</compile_context>

<pallas_src>
import itertools

import numpy as np
import jax
import jax.numpy as jnp
from jax import lax
from jax.experimental import pallas as pl
from jax.experimental.pallas import tpu as pltpu


def _round_up(x, m):
    return ((x + m - 1) // m) * m


def _row_tile_shape(D):
    """Factor a flattened row of D elements into a (sublane, lane) tile."""
    if D % 1024 == 0:
        return 8, D // 8            # full 8 sublanes, lane dim a multiple of 128
    if D % 128 == 0:
        return D // 128, 128        # lane-dense, partial sublanes
    if D % 8 == 0:
        return 8, D // 8
    return 1, D


# ----------------------------------------------------------------------------
# Kernel 1: manual-DMA gather + per-sample mixup, R rows per grid step.
#   out[n] = (1 - lam[n]) * src[x1_idx[n]] + lam[n] * src[x2_idx[n]]
# ----------------------------------------------------------------------------
def _make_gather_mixup_kernel(rows_per_step):
    R = rows_per_step

    def kernel(x1_ref, x2_ref, lam_ref, mix_ref, src_ref, out_ref,
               buf1, buf2, sem1, sem2):
        step = pl.program_id(0)
        base = step * R

        # Issue all row-gather DMAs for this step up front so they overlap each other.
        for r in range(R):                                   # static unroll
            i1 = x1_ref[base + r]
            pltpu.make_async_copy(src_ref.at[i1], buf1.at[r], sem1.at[r]).start()

            @pl.when(mix_ref[base + r] != 0)                 # lam == 0 -> skip 2nd gather
            def _start_x2(r=r):
                i2 = x2_ref[base + r]
                pltpu.make_async_copy(src_ref.at[i2], buf2.at[r], sem2.at[r]).start()

        # Wait per row and mix.  Each row tile is (S, L) with L lane-dense, so the
        # VALU work runs on full vregs and the stores are unmasked full-tile vst.
        for r in range(R):
            pltpu.make_async_copy(src_ref.at[0], buf1.at[r], sem1.at[r]).wait()
            use_mix = mix_ref[base + r] != 0

            @pl.when(use_mix)
            def _wait_x2(r=r):
                pltpu.make_async_copy(src_ref.at[0], buf2.at[r], sem2.at[r]).wait()

            lam_r = lam_ref[base + r]                        # f32 scalar from SMEM
            a = buf1[r].astype(jnp.float32)                  # upcast in-vreg only
            b = buf2[r].astype(jnp.float32)                  # stale if the x2 DMA was skipped...
            mixed = a + lam_r * (b - a)                      # == (1 - lam) * a + lam * b
            # ...so select `a` directly for lam == 0 rows (also avoids 0 * NaN garbage).
            out_ref[r] = jnp.where(use_mix, mixed, a).astype(out_ref.dtype)

    return kernel


def gather_mixup(src, x1_idx, x2_idx, lam, max_rows_per_step=8):
    """Fused gather + mixup directly on the source buffer.

    src:     [Nsrc, *img]  image tensor (native dtype preserved end-to-end)
    x1_idx:  [N] int32 row indices into src
    x2_idx:  [N] int32 row indices into src
    lam:     [N] f32 per-sample mixing coefficient (0 == mixup not applied)
    returns: [N, *img] in src.dtype
    """
    # Mixup on integer images would truncate (correctness-review note).
    assert jnp.issubdtype(src.dtype, jnp.floating), "gather_mixup expects float images"

    img_shape = src.shape[1:]
    D = int(np.prod(img_shape))
    Nsrc = int(src.shape[0])
    x1 = np.asarray(x1_idx, np.int32)
    x2 = np.asarray(x2_idx, np.int32)
    lam = np.asarray(lam, np.float32)
    N = int(x1.shape[0])
    S, L = _row_tile_shape(D)

    # Rows per grid step: amortize the ~0.35 us per-step overhead, while keeping
    # (2 gather buffers + double-buffered output block) ~= 4 * R * row_bytes well
    # inside v7x's 32 MiB default scoped-VMEM limit (64 MiB physical on v7x).
    row_bytes = D * int(src.dtype.itemsize)
    R = int(min(max_rows_per_step, max(1, (6 << 20) // max(row_bytes, 1))))

    n_steps = -(-N // R)
    Npad = n_steps * R
    x1p = np.zeros(Npad, np.int32); x1p[:N] = x1
    x2p = np.zeros(Npad, np.int32); x2p[:N] = x2
    lamp = np.zeros(Npad, np.float32); lamp[:N] = lam
    mixp = (lamp != 0.0).astype(np.int32)        # int flag -> pl.when on the scalar path

    src3 = src.reshape(Nsrc, S, L)               # lane-dense row tiles (metadata only)

    out = pl.pallas_call(
        _make_gather_mixup_kernel(R),
        out_shape=jax.ShapeDtypeStruct((Npad, S, L), src.dtype),
        grid_spec=pltpu.PrefetchScalarGridSpec(
            num_scalar_prefetch=4,               # x1_idx, x2_idx, lam, mix_flag -> SMEM
            grid=(n_steps,),
            in_specs=[pl.BlockSpec(memory_space=pl.ANY)],   # src stays in HBM; manual DMA
            out_specs=pl.BlockSpec((R, S, L), lambda s, i1, i2, lm, mf: (s, 0, 0)),
            scratch_shapes=[
                pltpu.VMEM((R, S, L), src.dtype),           # x1 gather buffer
                pltpu.VMEM((R, S, L), src.dtype),           # x2 gather buffer
                pltpu.SemaphoreType.DMA((R,)),
                pltpu.SemaphoreType.DMA((R,)),
            ],
        ),
        compiler_params=pltpu.CompilerParams(
            dimension_semantics=("parallel",)),  # each step is self-contained -> safe to
                                                 # shard across v7x's 2 TensorCores
    )(jnp.asarray(x1p), jnp.asarray(x2p), jnp.asarray(lamp), jnp.asarray(mixp), src3)

    if Npad != N:
        out = out[:N]
    return out.reshape((N,) + img_shape)


# ----------------------------------------------------------------------------
# Kernel 2: pairwise distances of class means + softmax(1/dist) over the strict
#           upper triangle  (== F.softmax(1 / torch.pdist(classes_mean))).
#           Rows padded to a sublane multiple only; output lane dim padded to 128.
# ----------------------------------------------------------------------------
def _make_pdist_softmax_kernel(num_valid):
    nv = int(num_valid)

    def kernel(cm_ref, probs_ref):
        c_rows, c_cols = probs_ref.shape                 # (ceil(C/8)*8, ceil(C/128)*128)
        xr = cm_ref[0:c_rows, :].astype(jnp.float32)     # [Cr, D]  row operand
        xc = cm_ref[...].astype(jnp.float32)             # [Ccol, D] column operand
        # Gram without materializing x.T (contract last dims directly on the MXU).
        gram = lax.dot_general(
            xr, xc, dimension_numbers=(((1,), (1,)), ((), ())),
            preferred_element_type=jnp.float32)           # [Cr, Ccol]
        sq_r = jnp.sum(xr * xr, axis=-1, keepdims=True)   # [Cr, 1]
        # Column squared norms as a [1, Ccol] row vector via a tiny ones-matmul —
        # the MXU is idle here and this avoids a sublane->lane transpose.
        ones_row = jnp.ones((1, xc.shape[1]), jnp.float32)
        sq_c = lax.dot_general(
            ones_row, xc * xc, dimension_numbers=(((1,), (1,)), ((), ())),
            preferred_element_type=jnp.float32)           # [1, Ccol]
        d2 = jnp.maximum(sq_r + sq_c - 2.0 * gram, 0.0)
        # Single EUP rsqrt instead of sqrt + reciprocal; eps floors near-duplicate
        # prototypes so identical class means cannot produce inf/NaN logits.
        inv_dist = lax.rsqrt(d2 + 1e-12)
        row = lax.broadcasted_iota(jnp.int32, (c_rows, c_cols), 0)
        col = lax.broadcasted_iota(jnp.int32, (c_rows, c_cols), 1)
        mask = (col > row) & (row < nv) & (col < nv)      # strict upper triangle (valid classes)
        logits = jnp.where(mask, inv_dist, -jnp.inf)
        m = jnp.max(jnp.max(logits, axis=-1, keepdims=True), axis=0, keepdims=True)
        e = jnp.where(mask, jnp.exp(logits - m), 0.0)
        denom = jnp.sum(jnp.sum(e, axis=-1, keepdims=True), axis=0, keepdims=True)
        probs_ref[...] = e / denom

    return kernel


def pdist_softmax_sample_probs(classes_mean):
    """softmax(1 / pdist(non-zero class means)) in torch.pdist flat order, plus the
    non-zero / zero class index partitions (NumPy, for the host sampling logic)."""
    cm = jnp.asarray(classes_mean, jnp.float32)
    class_num, feat_dim = cm.shape
    # Only a tiny [class_num] bool mask is synced to host; classes_mean itself never
    # round-trips (row compaction + padding stay on device).
    nz_mask = np.asarray(jnp.sum(jnp.abs(cm), axis=1) > 0)
    nonZero_class = np.arange(class_num)[nz_mask]
    Zero_class = np.arange(class_num)[~nz_mask]
    C = int(nz_mask.sum())
    if C < 2:
        # < 2 prototypes: pdist is empty and softmax would be NaN; guard explicitly.
        raise ValueError("need at least two non-zero class prototypes for pair sampling")
    Cr = _round_up(C, 8)            # sublane-multiple rows only
    Ccol = _round_up(C, 128)        # lane-dense (unmasked) output stores
    cm_nz = jnp.take(cm, jnp.asarray(nonZero_class, dtype=jnp.int32), axis=0)
    cm_pad = jnp.zeros((Ccol, feat_dim), jnp.float32).at[:C, :].set(cm_nz)

    # TODO(synk): for tens of classes a plain jnp version may beat the kernel-launch cost;
    # kept as a Pallas kernel per the port's scope.
    probs_mat = pl.pallas_call(
        _make_pdist_softmax_kernel(C),
        out_shape=jax.ShapeDtypeStruct((Cr, Ccol), jnp.float32),
    )(cm_pad)

    # Single small D2H sync: the probabilities drive host-side sampling anyway.
    probs_np = np.asarray(probs_mat)
    iu0, iu1 = np.triu_indices(C, k=1)          # torch.pdist flat ordering
    sample_p = probs_np[iu0, iu1]
    return sample_p, nonZero_class, Zero_class


# ----------------------------------------------------------------------------
# Tiny label mix: plain jnp (a pallas_call launch would cost more than the math).
# ----------------------------------------------------------------------------
def mix_labels(mem_y_mix):
    y0 = mem_y_mix[:, 0]
    y1 = mem_y_mix[:, 1]
    lam = mem_y_mix[:, 2]
    return y0 + lam * (y1 - y0)                 # == (1 - lam) * y0 + lam * y1


# ----------------------------------------------------------------------------
# Forward pass (host orchestration mirroring the PyTorch module)
# ----------------------------------------------------------------------------
def adaptive_prototypical_feedback_forward(
    mem_x, mem_y, buffer_batch_size, classes_mean, task_id,
    buffer_x, buffer_y,
    *, mixup_base_rate, mixup_p, mixup_lower, mixup_upper, mixup_alpha,
    class_per_task, rng,
):
    base_sample_num = int(buffer_batch_size * mixup_base_rate)
    indices = rng.choice(mem_x.shape[0], base_sample_num, replace=False).astype(np.int32)
    mem_y_base = jnp.take(mem_y, jnp.asarray(indices), axis=0).astype(jnp.float32)

    # ---- RandomMixUpV2(p, lambda_val=(lower, upper)) emulation ------------
    # TODO(synk): kornia RandomMixUpV2 RNG semantics are emulated (per-sample uniform
    # lambda in (lower, upper), gated by Bernoulli(p)); formula / [orig, perm, lam]
    # label format matches the reference module.
    Nb = base_sample_num
    perm = rng.permutation(Nb)
    applied = (rng.random(Nb) < mixup_p).astype(np.float32)
    lam_base = rng.uniform(mixup_lower, mixup_upper, Nb).astype(np.float32) * applied

    # Gather + mix fused in one Pallas kernel, directly on mem_x (no host gather copies).
    mem_x_base_mix = gather_mixup(mem_x, indices, indices[perm], lam_base)
    mem_y_base_mix = jnp.stack(
        [mem_y_base, mem_y_base[jnp.asarray(perm)], jnp.asarray(lam_base)], axis=1
    )  # [Nb, 3]

    prob_sample_num = buffer_batch_size - base_sample_num
    if prob_sample_num != 0:
        # --- Pallas: pdist + softmax(1/dist) over non-zero prototypes -------
        sample_p, nonZero_class, Zero_class = pdist_softmax_sample_probs(classes_mean)

        mix_x_by_prob, mix_y_by_prob = _make_mix_pair(
            sample_p, prob_sample_num, nonZero_class, Zero_class, task_id,
            buffer_x, buffer_y,
            mixup_p=mixup_p, mixup_alpha=mixup_alpha,
            class_per_task=class_per_task, rng=rng,
        )

        mem_x_out = jnp.concatenate([mem_x_base_mix, mix_x_by_prob])
        mem_y_mix = jnp.concatenate([mem_y_base_mix, mix_y_by_prob])
        new_mem_y = mix_labels(mem_y_mix)
        return mem_x_out, new_mem_y, mem_y_mix
    else:
        new_mem_y = mix_labels(mem_y_base_mix)
        return mem_x_base_mix, new_mem_y, mem_y_base_mix


def _make_mix_pair(sample_prob, prob_sample_num, nonZero_class, Zero_class,
                   current_task_id, buffer_x, buffer_y,
                   *, mixup_p, mixup_alpha, class_per_task, rng):
    start_i = 0
    end_i = (current_task_id + 1) * class_per_task

    sample_num = np.round(sample_prob * prob_sample_num)
    diff = int(prob_sample_num - sample_num.sum())
    if diff > 0:
        add_idx = rng.permutation(sample_num.shape[0])[:diff]
        sample_num[add_idx] += 1
    elif diff < 0:
        reduce_idx = np.nonzero(sample_num)[0]
        reduce_idx_ = rng.permutation(reduce_idx.shape[0])[:-diff]
        sample_num[reduce_idx[reduce_idx_]] -= 1
    # Sum is forced to prob_sample_num -> the mixup output shape is FIXED per
    # configuration, so the gather_mixup kernel compiles exactly once.
    assert int(sample_num.sum()) == prob_sample_num

    y_buf = np.asarray(buffer_y).argmax(axis=1)
    x_indices = np.arange(buffer_x.shape[0])
    class_x_list = []
    class_id_map = {}
    zero_set = set(Zero_class.tolist())
    for t in range(start_i, end_i):
        if t in zero_set:
            continue
        idx = x_indices[y_buf == t]
        if idx.size == 0:
            continue
        class_x_list.append(idx)
        class_id_map[t] = len(class_x_list) - 1

    all_x1_idx, all_x2_idx, all_lam, all_y = [], [], [], []
    for pair_i, (a, b) in enumerate(itertools.combinations(nonZero_class.tolist(), 2)):
        n = int(sample_num[pair_i])
        if n == 0:
            continue
        first_class_y, second_class_y = a, b
        if first_class_y not in class_id_map:
            first_class_y = int(rng.choice(list(class_id_map.keys()), 1)[0])
        if second_class_y not in class_id_map:
            second_class_y = int(rng.choice(list(class_id_map.keys()), 1)[0])
        i1 = rng.choice(class_x_list[class_id_map[first_class_y]], n)
        i2 = rng.choice(class_x_list[class_id_map[second_class_y]], n)
        if rng.random() <= mixup_p:
            lam_pair = rng.beta(mixup_alpha, mixup_alpha, n).astype(np.float32)
        else:
            lam_pair = np.zeros(n, dtype=np.float32)
        all_x1_idx.append(i1)
        all_x2_idx.append(i2)
        all_lam.append(lam_pair)
        y3 = np.zeros((n, 3), dtype=np.float32)
        y3[:, 0] = first_class_y
        y3[:, 1] = second_class_y
        y3[:, 2] = lam_pair
        all_y.append(y3)

    x1_idx = np.concatenate(all_x1_idx).astype(np.int32)
    x2_idx = np.concatenate(all_x2_idx).astype(np.int32)
    lam_prob = np.concatenate(all_lam).astype(np.float32)
    mix_y_prob = jnp.asarray(np.concatenate(all_y))

    # Gather + mix fused directly on buffer_x (no buffer_x[idx] HBM materialization).
    mix_x_prob = gather_mixup(buffer_x, x1_idx, x2_idx, lam_prob)
    return mix_x_prob, mix_y_prob


# ----------------------------------------------------------------------------
# Demo
# ----------------------------------------------------------------------------
if __name__ == "__main__":
    key = jax.random.PRNGKey(0)
    k_mem, k_lab, k_buf, k_cm = jax.random.split(key, 4)

    # Module hyperparameters (deterministic, in-script)
    mixup_base_rate = 0.5
    mixup_p = 0.5
    mixup_lower, mixup_upper = 0.1, 0.4
    mixup_alpha = 0.4
    class_per_task = 2
    task_id = 4
    num_classes = 10
    feat_dim = 128

    # Inputs (small shapes; D = 4*16*16 = 1024 -> full (8, 128) row tiles)
    B, C, H, W = 16, 4, 16, 16
    n_buf = 64
    buffer_batch_size = 16

    mem_x = jax.random.normal(k_mem, (B, C, H, W), dtype=jnp.float32)
    mem_y = jax.random.randint(k_lab, (B,), 0, num_classes).astype(jnp.float32)

    buffer_x = jax.random.normal(k_buf, (n_buf, C, H, W), dtype=jnp.float32)
    buf_labels = np.arange(n_buf) % num_classes
    buffer_y = jnp.asarray(np.eye(num_classes, dtype=np.float32)[buf_labels])

    classes_mean = jax.random.normal(k_cm, (num_classes, feat_dim), dtype=jnp.float32)
    # last two classes have no prototype yet (zero rows -> filtered out)
    classes_mean = classes_mean.at[num_classes - 2:].set(0.0)

    rng = np.random.default_rng(0)  # deterministic host-side sampling

    out_x, out_y, out_y_mix = adaptive_prototypical_feedback_forward(
        mem_x, mem_y, buffer_batch_size, classes_mean, task_id,
        buffer_x, buffer_y,
        mixup_base_rate=mixup_base_rate, mixup_p=mixup_p,
        mixup_lower=mixup_lower, mixup_upper=mixup_upper,
        mixup_alpha=mixup_alpha, class_per_task=class_per_task, rng=rng,
    )

    jax.block_until_ready((out_x, out_y, out_y_mix))
    assert out_x.shape == (buffer_batch_size, C, H, W)
    assert out_x.dtype == mem_x.dtype          # native dtype preserved
    assert out_y.shape == (buffer_batch_size,)
    assert out_y_mix.shape == (buffer_batch_size, 3)
    assert bool(jnp.all(jnp.isfinite(out_x))) and bool(jnp.all(jnp.isfinite(out_y)))
    print("KERNEL_OK")
</pallas_src>

<mosaic_0001>
module attributes {stable_mosaic.version = 11 : i64} {
  func.func @kernel(%arg0: i32, %arg1: memref<8xi32, #tpu.memory_space<smem>>, %arg2: memref<8xi32, #tpu.memory_space<smem>>, %arg3: memref<8xf32, #tpu.memory_space<smem>>, %arg4: memref<8xi32, #tpu.memory_space<smem>>, %arg5: memref<16x8x128xf32, #tpu.memory_space<any>>, %arg6: memref<8x8x128xf32, #tpu.memory_space<vmem>>, %arg7: memref<8x8x128xf32, #tpu.memory_space<vmem>>, %arg8: memref<8x8x128xf32, #tpu.memory_space<vmem>>, %arg9: memref<8x!tpu.dma_semaphore, #tpu.memory_space<semaphore_mem>>, %arg10: memref<8x!tpu.dma_semaphore, #tpu.memory_space<semaphore_mem>>) attributes {dimension_semantics = [#tpu.dimension_semantics<parallel>], iteration_bounds = array<i64: 1>, scalar_prefetch = 4 : i64, scratch_operands = 4 : i64, tpu.core_type = #tpu.core_type<tc>, window_params = [{}, {transform_indices = @transform_1, window_bounds = array<i64: 8, 8, 128>}]} {
    %c8_i32 = arith.constant 8 : i32
    %0 = arith.muli %arg0, %c8_i32 : i32
    %c0_i32 = arith.constant 0 : i32
    %1 = arith.addi %0, %c0_i32 : i32
    %2 = arith.index_cast %1 : i32 to index
    %3 = memref.load %arg1[%2] : memref<8xi32, #tpu.memory_space<smem>>
    %c0_i32_0 = arith.constant 0 : i32
    %c0_i32_1 = arith.constant 0 : i32
    %c0_i32_2 = arith.constant 0 : i32
    %c0_i32_3 = arith.constant 0 : i32
    %4 = tpu.memref_slice %arg5[%3, %c0_i32_2, %c0_i32_3] : memref<16x8x128xf32, #tpu.memory_space<any>> -> memref<1x8x128xf32, #tpu.memory_space<any>>
    %5 = tpu.memref_squeeze %4 : memref<1x8x128xf32, #tpu.memory_space<any>> -> memref<8x128xf32, #tpu.memory_space<any>>
    %c0_i32_4 = arith.constant 0 : i32
    %c0_i32_5 = arith.constant 0 : i32
    %6 = tpu.memref_slice %arg7[%c0_i32_0, %c0_i32_4, %c0_i32_5] : memref<8x8x128xf32, #tpu.memory_space<vmem>> -> memref<1x8x128xf32, #tpu.memory_space<vmem>>
    %7 = tpu.memref_squeeze %6 : memref<1x8x128xf32, #tpu.memory_space<vmem>> -> memref<8x128xf32, #tpu.memory_space<vmem>>
    %8 = tpu.memref_slice %arg9[%c0_i32_1] : memref<8x!tpu.dma_semaphore, #tpu.memory_space<semaphore_mem>> -> memref<1x!tpu.dma_semaphore, #tpu.memory_space<semaphore_mem>>
    %9 = tpu.memref_squeeze %8 : memref<1x!tpu.dma_semaphore, #tpu.memory_space<semaphore_mem>> -> memref<!tpu.dma_semaphore, #tpu.memory_space<semaphore_mem>>
    tpu.enqueue_dma source(%5 : memref<8x128xf32, #tpu.memory_space<any>>) target(%7 : memref<8x128xf32, #tpu.memory_space<vmem>>) target_semaphore(%9 : memref<!tpu.dma_semaphore, #tpu.memory_space<semaphore_mem>>)
    %c0_i32_6 = arith.constant 0 : i32
    %10 = arith.addi %0, %c0_i32_6 : i32
    %11 = arith.index_cast %10 : i32 to index
    %12 = memref.load %arg4[%11] : memref<8xi32, #tpu.memory_space<smem>>
    %c0_i32_7 = arith.constant 0 : i32
    %13 = arith.cmpi ne, %12, %c0_i32_7 : i32
    %14 = arith.extui %13 : i1 to i32
    %c0_i32_8 = arith.constant 0 : i32
    %15 = arith.cmpi ne, %14, %c0_i32_8 : i32
    scf.if %15 {
      %c0_i32_224 = arith.constant 0 : i32
      %337 = arith.addi %0, %c0_i32_224 : i32
      %338 = arith.index_cast %337 : i32 to index
      %339 = memref.load %arg2[%338] : memref<8xi32, #tpu.memory_space<smem>>
      %c0_i32_225 = arith.constant 0 : i32
      %c0_i32_226 = arith.constant 0 : i32
      %c0_i32_227 = arith.constant 0 : i32
      %c0_i32_228 = arith.constant 0 : i32
      %340 = tpu.memref_slice %arg5[%339, %c0_i32_227, %c0_i32_228] : memref<16x8x128xf32, #tpu.memory_space<any>> -> memref<1x8x128xf32, #tpu.memory_space<any>>
      %341 = tpu.memref_squeeze %340 : memref<1x8x128xf32, #tpu.memory_space<any>> -> memref<8x128xf32, #tpu.memory_space<any>>
      %c0_i32_229 = arith.constant 0 : i32
      %c0_i32_230 = arith.constant 0 : i32
      %342 = tpu.memref_slice %arg8[%c0_i32_225, %c0_i32_229, %c0_i32_230] : memref<8x8x128xf32, #tpu.memory_space<vmem>> -> memref<1x8x128xf32, #tpu.memory_space<vmem>>
      %343 = tpu.memref_squeeze %342 : memref<1x8x128xf32, #tpu.memory_space<vmem>> -> memref<8x128xf32, #tpu.memory_space<vmem>>
      %344 = tpu.memref_slice %arg10[%c0_i32_226] : memref<8x!tpu.dma_semaphore, #tpu.memory_space<semaphore_mem>> -> memref<1x!tpu.dma_semaphore, #tpu.memory_space<semaphore_mem>>
      %345 = tpu.memref_squeeze %344 : memref<1x!tpu.dma_semaphore, #tpu.memory_space<semaphore_mem>> -> memref<!tpu.dma_semaphore, #tpu.memory_space<semaphore_mem>>
      tpu.enqueue_dma source(%341 : memref<8x128xf32, #tpu.memory_space<any>>) target(%343 : memref<8x128xf32, #tpu.memory_space<vmem>>) target_semaphore(%345 : memref<!tpu.dma_semaphore, #tpu.memory_space<semaphore_mem>>)
    } else {
    }
    %c1_i32 = arith.constant 1 : i32
    %16 = arith.addi %0, %c1_i32 : i32
    %17 = arith.index_cast %16 : i32 to index
    %18 = memref.load %arg1[%17] : memref<8xi32, #tpu.memory_space<smem>>
    %c1_i32_9 = arith.constant 1 : i32
    %c1_i32_10 = arith.constant 1 : i32
    %c0_i32_11 = arith.constant 0 : i32
    %c0_i32_12 = arith.constant 0 : i32
    %19 = tpu.memref_slice %arg5[%18, %c0_i32_11, %c0_i32_12] : memref<16x8x128xf32, #tpu.memory_space<any>> -> memref<1x8x128xf32, #tpu.memory_space<any>>
    %20 = tpu.memref_squeeze %19 : memref<1x8x128xf32, #tpu.memory_space<any>> -> memref<8x128xf32, #tpu.memory_space<any>>
    %c0_i32_13 = arith.constant 0 : i32
    %c0_i32_14 = arith.constant 0 : i32
    %21 = tpu.memref_slice %arg7[%c1_i32_9, %c0_i32_13, %c0_i32_14] : memref<8x8x128xf32, #tpu.memory_space<vmem>> -> memref<1x8x128xf32, #tpu.memory_space<vmem>>
    %22 = tpu.memref_squeeze %21 : memref<1x8x128xf32, #tpu.memory_space<vmem>> -> memref<8x128xf32, #tpu.memory_space<vmem>>
    %23 = tpu.memref_slice %arg9[%c1_i32_10] : memref<8x!tpu.dma_semaphore, #tpu.memory_space<semaphore_mem>> -> memref<1x!tpu.dma_semaphore, #tpu.memory_space<semaphore_mem>>
    %24 = tpu.memref_squeeze %23 : memref<1x!tpu.dma_semaphore, #tpu.memory_space<semaphore_mem>> -> memref<!tpu.dma_semaphore, #tpu.memory_space<semaphore_mem>>
    tpu.enqueue_dma source(%20 : memref<8x128xf32, #tpu.memory_space<any>>) target(%22 : memref<8x128xf32, #tpu.memory_space<vmem>>) target_semaphore(%24 : memref<!tpu.dma_semaphore, #tpu.memory_space<semaphore_mem>>)
    %c1_i32_15 = arith.constant 1 : i32
    %25 = arith.addi %0, %c1_i32_15 : i32
    %26 = arith.index_cast %25 : i32 to index
    %27 = memref.load %arg4[%26] : memref<8xi32, #tpu.memory_space<smem>>
    %c0_i32_16 = arith.constant 0 : i32
    %28 = arith.cmpi ne, %27, %c0_i32_16 : i32
    %29 = arith.extui %28 : i1 to i32
    %c0_i32_17 = arith.constant 0 : i32
    %30 = arith.cmpi ne, %29, %c0_i32_17 : i32
    scf.if %30 {
      %c1_i32_224 = arith.constant 1 : i32
      %337 = arith.addi %0, %c1_i32_224 : i32
      %338 = arith.index_cast %337 : i32 to index
      %339 = memref.load %arg2[%338] : memref<8xi32, #tpu.memory_space<smem>>
      %c1_i32_225 = arith.constant 1 : i32
      %c1_i32_226 = arith.constant 1 : i32
      %c0_i32_227 = arith.constant 0 : i32
      %c0_i32_228 = arith.constant 0 : i32
      %340 = tpu.memref_slice %arg5[%339, %c0_i32_227, %c0_i32_228] : memref<16x8x128xf32, #tpu.memory_space<any>> -> memref<1x8x128xf32, #tpu.memory_space<any>>
      %341 = tpu.memref_squeeze %340 : memref<1x8x128xf32, #tpu.memory_space<any>> -> memref<8x128xf32, #tpu.memory_space<any>>
      %c0_i32_229 = arith.constant 0 : i32
      %c0_i32_230 = arith.constant 0 : i32
      %342 = tpu.memref_slice %arg8[%c1_i32_225, %c0_i32_229, %c0_i32_230] : memref<8x8x128xf32, #tpu.memory_space<vmem>> -> memref<1x8x128xf32, #tpu.memory_space<vmem>>
      %343 = tpu.memref_squeeze %342 : memref<1x8x128xf32, #tpu.memory_space<vmem>> -> memref<8x128xf32, #tpu.memory_space<vmem>>
      %344 = tpu.memref_slice %arg10[%c1_i32_226] : memref<8x!tpu.dma_semaphore, #tpu.memory_space<semaphore_mem>> -> memref<1x!tpu.dma_semaphore, #tpu.memory_space<semaphore_mem>>
      %345 = tpu.memref_squeeze %344 : memref<1x!tpu.dma_semaphore, #tpu.memory_space<semaphore_mem>> -> memref<!tpu.dma_semaphore, #tpu.memory_space<semaphore_mem>>
      tpu.enqueue_dma source(%341 : memref<8x128xf32, #tpu.memory_space<any>>) target(%343 : memref<8x128xf32, #tpu.memory_space<vmem>>) target_semaphore(%345 : memref<!tpu.dma_semaphore, #tpu.memory_space<semaphore_mem>>)
    } else {
    }
    %c2_i32 = arith.constant 2 : i32
    %31 = arith.addi %0, %c2_i32 : i32
    %32 = arith.index_cast %31 : i32 to index
    %33 = memref.load %arg1[%32] : memref<8xi32, #tpu.memory_space<smem>>
    %c2_i32_18 = arith.constant 2 : i32
    %c2_i32_19 = arith.constant 2 : i32
    %c0_i32_20 = arith.constant 0 : i32
    %c0_i32_21 = arith.constant 0 : i32
    %34 = tpu.memref_slice %arg5[%33, %c0_i32_20, %c0_i32_21] : memref<16x8x128xf32, #tpu.memory_space<any>> -> memref<1x8x128xf32, #tpu.memory_space<any>>
    %35 = tpu.memref_squeeze %34 : memref<1x8x128xf32, #tpu.memory_space<any>> -> memref<8x128xf32, #tpu.memory_space<any>>
    %c0_i32_22 = arith.constant 0 : i32
    %c0_i32_23 = arith.constant 0 : i32
    %36 = tpu.memref_slice %arg7[%c2_i32_18, %c0_i32_22, %c0_i32_23] : memref<8x8x128xf32, #tpu.memory_space<vmem>> -> memref<1x8x128xf32, #tpu.memory_space<vmem>>
    %37 = tpu.memref_squeeze %36 : memref<1x8x128xf32, #tpu.memory_space<vmem>> -> memref<8x128xf32, #tpu.memory_space<vmem>>
    %38 = tpu.memref_slice %arg9[%c2_i32_19] : memref<8x!tpu.dma_semaphore, #tpu.memory_space<semaphore_mem>> -> memref<1x!tpu.dma_semaphore, #tpu.memory_space<semaphore_mem>>
    %39 = tpu.memref_squeeze %38 : memref<1x!tpu.dma_semaphore, #tpu.memory_space<semaphore_mem>> -> memref<!tpu.dma_semaphore, #tpu.memory_space<semaphore_mem>>
    tpu.enqueue_dma source(%35 : memref<8x128xf32, #tpu.memory_space<any>>) target(%37 : memref<8x128xf32, #tpu.memory_space<vmem>>) target_semaphore(%39 : memref<!tpu.dma_semaphore, #tpu.memory_space<semaphore_mem>>)
    %c2_i32_24 = arith.constant 2 : i32
    %40 = arith.addi %0, %c2_i32_24 : i32
    %41 = arith.index_cast %40 : i32 to index
    %42 = memref.load %arg4[%41] : memref<8xi32, #tpu.memory_space<smem>>
    %c0_i32_25 = arith.constant 0 : i32
    %43 = arith.cmpi ne, %42, %c0_i32_25 : i32
    %44 = arith.extui %43 : i1 to i32
    %c0_i32_26 = arith.constant 0 : i32
    %45 = arith.cmpi ne, %44, %c0_i32_26 : i32
    scf.if %45 {
      %c2_i32_224 = arith.constant 2 : i32
      %337 = arith.addi %0, %c2_i32_224 : i32
      %338 = arith.index_cast %337 : i32 to index
      %339 = memref.load %arg2[%338] : memref<8xi32, #tpu.memory_space<smem>>
      %c2_i32_225 = arith.constant 2 : i32
      %c2_i32_226 = arith.constant 2 : i32
      %c0_i32_227 = arith.constant 0 : i32
      %c0_i32_228 = arith.constant 0 : i32
      %340 = tpu.memref_slice %arg5[%339, %c0_i32_227, %c0_i32_228] : memref<16x8x128xf32, #tpu.memory_space<any>> -> memref<1x8x128xf32, #tpu.memory_space<any>>
      %341 = tpu.memref_squeeze %340 : memref<1x8x128xf32, #tpu.memory_space<any>> -> memref<8x128xf32, #tpu.memory_space<any>>
      %c0_i32_229 = arith.constant 0 : i32
      %c0_i32_230 = arith.constant 0 : i32
      %342 = tpu.memref_slice %arg8[%c2_i32_225, %c0_i32_229, %c0_i32_230] : memref<8x8x128xf32, #tpu.memory_space<vmem>> -> memref<1x8x128xf32, #tpu.memory_space<vmem>>
      %343 = tpu.memref_squeeze %342 : memref<1x8x128xf32, #tpu.memory_space<vmem>> -> memref<8x128xf32, #tpu.memory_space<vmem>>
      %344 = tpu.memref_slice %arg10[%c2_i32_226] : memref<8x!tpu.dma_semaphore, #tpu.memory_space<semaphore_mem>> -> memref<1x!tpu.dma_semaphore, #tpu.memory_space<semaphore_mem>>
      %345 = tpu.memref_squeeze %344 : memref<1x!tpu.dma_semaphore, #tpu.memory_space<semaphore_mem>> -> memref<!tpu.dma_semaphore, #tpu.memory_space<semaphore_mem>>
      tpu.enqueue_dma source(%341 : memref<8x128xf32, #tpu.memory_space<any>>) target(%343 : memref<8x128xf32, #tpu.memory_space<vmem>>) target_semaphore(%345 : memref<!tpu.dma_semaphore, #tpu.memory_space<semaphore_mem>>)
    } else {
    }
    %c3_i32 = arith.constant 3 : i32
    %46 = arith.addi %0, %c3_i32 : i32
    %47 = arith.index_cast %46 : i32 to index
    %48 = memref.load %arg1[%47] : memref<8xi32, #tpu.memory_space<smem>>
    %c3_i32_27 = arith.constant 3 : i32
    %c3_i32_28 = arith.constant 3 : i32
    %c0_i32_29 = arith.constant 0 : i32
    %c0_i32_30 = arith.constant 0 : i32
    %49 = tpu.memref_slice %arg5[%48, %c0_i32_29, %c0_i32_30] : memref<16x8x128xf32, #tpu.memory_space<any>> -> memref<1x8x128xf32, #tpu.memory_space<any>>
    %50 = tpu.memref_squeeze %49 : memref<1x8x128xf32, #tpu.memory_space<any>> -> memref<8x128xf32, #tpu.memory_space<any>>
    %c0_i32_31 = arith.constant 0 : i32
    %c0_i32_32 = arith.constant 0 : i32
    %51 = tpu.memref_slice %arg7[%c3_i32_27, %c0_i32_31, %c0_i32_32] : memref<8x8x128xf32, #tpu.memory_space<vmem>> -> memref<1x8x128xf32, #tpu.memory_space<vmem>>
    %52 = tpu.memref_squeeze %51 : memref<1x8x128xf32, #tpu.memory_space<vmem>> -> memref<8x128xf32, #tpu.memory_space<vmem>>
    %53 = tpu.memref_slice %arg9[%c3_i32_28] : memref<8x!tpu.dma_semaphore, #tpu.memory_space<semaphore_mem>> -> memref<1x!tpu.dma_semaphore, #tpu.memory_space<semaphore_mem>>
    %54 = tpu.memref_squeeze %53 : memref<1x!tpu.dma_semaphore, #tpu.memory_space<semaphore_mem>> -> memref<!tpu.dma_semaphore, #tpu.memory_space<semaphore_mem>>
    tpu.enqueue_dma source(%50 : memref<8x128xf32, #tpu.memory_space<any>>) target(%52 : memref<8x128xf32, #tpu.memory_space<vmem>>) target_semaphore(%54 : memref<!tpu.dma_semaphore, #tpu.memory_space<semaphore_mem>>)
    %c3_i32_33 = arith.constant 3 : i32
    %55 = arith.addi %0, %c3_i32_33 : i32
    %56 = arith.index_cast %55 : i32 to index
    %57 = memref.load %arg4[%56] : memref<8xi32, #tpu.memory_space<smem>>
    %c0_i32_34 = arith.constant 0 : i32
    %58 = arith.cmpi ne, %57, %c0_i32_34 : i32
    %59 = arith.extui %58 : i1 to i32
    %c0_i32_35 = arith.constant 0 : i32
    %60 = arith.cmpi ne, %59, %c0_i32_35 : i32
    scf.if %60 {
      %c3_i32_224 = arith.constant 3 : i32
      %337 = arith.addi %0, %c3_i32_224 : i32
      %338 = arith.index_cast %337 : i32 to index
      %339 = memref.load %arg2[%338] : memref<8xi32, #tpu.memory_space<smem>>
      %c3_i32_225 = arith.constant 3 : i32
      %c3_i32_226 = arith.constant 3 : i32
      %c0_i32_227 = arith.constant 0 : i32
      %c0_i32_228 = arith.constant 0 : i32
      %340 = tpu.memref_slice %arg5[%339, %c0_i32_227, %c0_i32_228] : memref<16x8x128xf32, #tpu.memory_space<any>> -> memref<1x8x128xf32, #tpu.memory_space<any>>
      %341 = tpu.memref_squeeze %340 : memref<1x8x128xf32, #tpu.memory_space<any>> -> memref<8x128xf32, #tpu.memory_space<any>>
      %c0_i32_229 = arith.constant 0 : i32
      %c0_i32_230 = arith.constant 0 : i32
      %342 = tpu.memref_slice %arg8[%c3_i32_225, %c0_i32_229, %c0_i32_230] : memref<8x8x128xf32, #tpu.memory_space<vmem>> -> memref<1x8x128xf32, #tpu.memory_space<vmem>>
      %343 = tpu.memref_squeeze %342 : memref<1x8x128xf32, #tpu.memory_space<vmem>> -> memref<8x128xf32, #tpu.memory_space<vmem>>
      %344 = tpu.memref_slice %arg10[%c3_i32_226] : memref<8x!tpu.dma_semaphore, #tpu.memory_space<semaphore_mem>> -> memref<1x!tpu.dma_semaphore, #tpu.memory_space<semaphore_mem>>
      %345 = tpu.memref_squeeze %344 : memref<1x!tpu.dma_semaphore, #tpu.memory_space<semaphore_mem>> -> memref<!tpu.dma_semaphore, #tpu.memory_space<semaphore_mem>>
      tpu.enqueue_dma source(%341 : memref<8x128xf32, #tpu.memory_space<any>>) target(%343 : memref<8x128xf32, #tpu.memory_space<vmem>>) target_semaphore(%345 : memref<!tpu.dma_semaphore, #tpu.memory_space<semaphore_mem>>)
    } else {
    }
    %c4_i32 = arith.constant 4 : i32
    %61 = arith.addi %0, %c4_i32 : i32
    %62 = arith.index_cast %61 : i32 to index
    %63 = memref.load %arg1[%62] : memref<8xi32, #tpu.memory_space<smem>>
    %c4_i32_36 = arith.constant 4 : i32
    %c4_i32_37 = arith.constant 4 : i32
    %c0_i32_38 = arith.constant 0 : i32
    %c0_i32_39 = arith.constant 0 : i32
    %64 = tpu.memref_slice %arg5[%63, %c0_i32_38, %c0_i32_39] : memref<16x8x128xf32, #tpu.memory_space<any>> -> memref<1x8x128xf32, #tpu.memory_space<any>>
    %65 = tpu.memref_squeeze %64 : memref<1x8x128xf32, #tpu.memory_space<any>> -> memref<8x128xf32, #tpu.memory_space<any>>
    %c0_i32_40 = arith.constant 0 : i32
    %c0_i32_41 = arith.constant 0 : i32
    %66 = tpu.memref_slice %arg7[%c4_i32_36, %c0_i32_40, %c0_i32_41] : memref<8x8x128xf32, #tpu.memory_space<vmem>> -> memref<1x8x128xf32, #tpu.memory_space<vmem>>
    %67 = tpu.memref_squeeze %66 : memref<1x8x128xf32, #tpu.memory_space<vmem>> -> memref<8x128xf32, #tpu.memory_space<vmem>>
    %68 = tpu.memref_slice %arg9[%c4_i32_37] : memref<8x!tpu.dma_semaphore, #tpu.memory_space<semaphore_mem>> -> memref<1x!tpu.dma_semaphore, #tpu.memory_space<semaphore_mem>>
    %69 = tpu.memref_squeeze %68 : memref<1x!tpu.dma_semaphore, #tpu.memory_space<semaphore_mem>> -> memref<!tpu.dma_semaphore, #tpu.memory_space<semaphore_mem>>
    tpu.enqueue_dma source(%65 : memref<8x128xf32, #tpu.memory_space<any>>) target(%67 : memref<8x128xf32, #tpu.memory_space<vmem>>) target_semaphore(%69 : memref<!tpu.dma_semaphore, #tpu.memory_space<semaphore_mem>>)
    %c4_i32_42 = arith.constant 4 : i32
    %70 = arith.addi %0, %c4_i32_42 : i32
    %71 = arith.index_cast %70 : i32 to index
    %72 = memref.load %arg4[%71] : memref<8xi32, #tpu.memory_space<smem>>
    %c0_i32_43 = arith.constant 0 : i32
    %73 = arith.cmpi ne, %72, %c0_i32_43 : i32
    %74 = arith.extui %73 : i1 to i32
    %c0_i32_44 = arith.constant 0 : i32
    %75 = arith.cmpi ne, %74, %c0_i32_44 : i32
    scf.if %75 {
      %c4_i32_224 = arith.constant 4 : i32
      %337 = arith.addi %0, %c4_i32_224 : i32
      %338 = arith.index_cast %337 : i32 to index
      %339 = memref.load %arg2[%338] : memref<8xi32, #tpu.memory_space<smem>>
      %c4_i32_225 = arith.constant 4 : i32
      %c4_i32_226 = arith.constant 4 : i32
      %c0_i32_227 = arith.constant 0 : i32
      %c0_i32_228 = arith.constant 0 : i32
      %340 = tpu.memref_slice %arg5[%339, %c0_i32_227, %c0_i32_228] : memref<16x8x128xf32, #tpu.memory_space<any>> -> memref<1x8x128xf32, #tpu.memory_space<any>>
      %341 = tpu.memref_squeeze %340 : memref<1x8x128xf32, #tpu.memory_space<any>> -> memref<8x128xf32, #tpu.memory_space<any>>
      %c0_i32_229 = arith.constant 0 : i32
      %c0_i32_230 = arith.constant 0 : i32
      %342 = tpu.memref_slice %arg8[%c4_i32_225, %c0_i32_229, %c0_i32_230] : memref<8x8x128xf32, #tpu.memory_space<vmem>> -> memref<1x8x128xf32, #tpu.memory_space<vmem>>
      %343 = tpu.memref_squeeze %342 : memref<1x8x128xf32, #tpu.memory_space<vmem>> -> memref<8x128xf32, #tpu.memory_space<vmem>>
      %344 = tpu.memref_slice %arg10[%c4_i32_226] : memref<8x!tpu.dma_semaphore, #tpu.memory_space<semaphore_mem>> -> memref<1x!tpu.dma_semaphore, #tpu.memory_space<semaphore_mem>>
      %345 = tpu.memref_squeeze %344 : memref<1x!tpu.dma_semaphore, #tpu.memory_space<semaphore_mem>> -> memref<!tpu.dma_semaphore, #tpu.memory_space<semaphore_mem>>
      tpu.enqueue_dma source(%341 : memref<8x128xf32, #tpu.memory_space<any>>) target(%343 : memref<8x128xf32, #tpu.memory_space<vmem>>) target_semaphore(%345 : memref<!tpu.dma_semaphore, #tpu.memory_space<semaphore_mem>>)
    } else {
    }
    %c5_i32 = arith.constant 5 : i32
    %76 = arith.addi %0, %c5_i32 : i32
    %77 = arith.index_cast %76 : i32 to index
    %78 = memref.load %arg1[%77] : memref<8xi32, #tpu.memory_space<smem>>
    %c5_i32_45 = arith.constant 5 : i32
    %c5_i32_46 = arith.constant 5 : i32
    %c0_i32_47 = arith.constant 0 : i32
    %c0_i32_48 = arith.constant 0 : i32
    %79 = tpu.memref_slice %arg5[%78, %c0_i32_47, %c0_i32_48] : memref<16x8x128xf32, #tpu.memory_space<any>> -> memref<1x8x128xf32, #tpu.memory_space<any>>
    %80 = tpu.memref_squeeze %79 : memref<1x8x128xf32, #tpu.memory_space<any>> -> memref<8x128xf32, #tpu.memory_space<any>>
    %c0_i32_49 = arith.constant 0 : i32
    %c0_i32_50 = arith.constant 0 : i32
    %81 = tpu.memref_slice %arg7[%c5_i32_45, %c0_i32_49, %c0_i32_50] : memref<8x8x128xf32, #tpu.memory_space<vmem>> -> memref<1x8x128xf32, #tpu.memory_space<vmem>>
    %82 = tpu.memref_squeeze %81 : memref<1x8x128xf32, #tpu.memory_space<vmem>> -> memref<8x128xf32, #tpu.memory_space<vmem>>
    %83 = tpu.memref_slice %arg9[%c5_i32_46] : memref<8x!tpu.dma_semaphore, #tpu.memory_space<semaphore_mem>> -> memref<1x!tpu.dma_semaphore, #tpu.memory_space<semaphore_mem>>
    %84 = tpu.memref_squeeze %83 : memref<1x!tpu.dma_semaphore, #tpu.memory_space<semaphore_mem>> -> memref<!tpu.dma_semaphore, #tpu.memory_space<semaphore_mem>>
    tpu.enqueue_dma source(%80 : memref<8x128xf32, #tpu.memory_space<any>>) target(%82 : memref<8x128xf32, #tpu.memory_space<vmem>>) target_semaphore(%84 : memref<!tpu.dma_semaphore, #tpu.memory_space<semaphore_mem>>)
    %c5_i32_51 = arith.constant 5 : i32
    %85 = arith.addi %0, %c5_i32_51 : i32
    %86 = arith.index_cast %85 : i32 to index
    %87 = memref.load %arg4[%86] : memref<8xi32, #tpu.memory_space<smem>>
    %c0_i32_52 = arith.constant 0 : i32
    %88 = arith.cmpi ne, %87, %c0_i32_52 : i32
    %89 = arith.extui %88 : i1 to i32
    %c0_i32_53 = arith.constant 0 : i32
    %90 = arith.cmpi ne, %89, %c0_i32_53 : i32
    scf.if %90 {
      %c5_i32_224 = arith.constant 5 : i32
      %337 = arith.addi %0, %c5_i32_224 : i32
      %338 = arith.index_cast %337 : i32 to index
      %339 = memref.load %arg2[%338] : memref<8xi32, #tpu.memory_space<smem>>
      %c5_i32_225 = arith.constant 5 : i32
      %c5_i32_226 = arith.constant 5 : i32
      %c0_i32_227 = arith.constant 0 : i32
      %c0_i32_228 = arith.constant 0 : i32
      %340 = tpu.memref_slice %arg5[%339, %c0_i32_227, %c0_i32_228] : memref<16x8x128xf32, #tpu.memory_space<any>> -> memref<1x8x128xf32, #tpu.memory_space<any>>
      %341 = tpu.memref_squeeze %340 : memref<1x8x128xf32, #tpu.memory_space<any>> -> memref<8x128xf32, #tpu.memory_space<any>>
      %c0_i32_229 = arith.constant 0 : i32
      %c0_i32_230 = arith.constant 0 : i32
      %342 = tpu.memref_slice %arg8[%c5_i32_225, %c0_i32_229, %c0_i32_230] : memref<8x8x128xf32, #tpu.memory_space<vmem>> -> memref<1x8x128xf32, #tpu.memory_space<vmem>>
      %343 = tpu.memref_squeeze %342 : memref<1x8x128xf32, #tpu.memory_space<vmem>> -> memref<8x128xf32, #tpu.memory_space<vmem>>
      %344 = tpu.memref_slice %arg10[%c5_i32_226] : memref<8x!tpu.dma_semaphore, #tpu.memory_space<semaphore_mem>> -> memref<1x!tpu.dma_semaphore, #tpu.memory_space<semaphore_mem>>
      %345 = tpu.memref_squeeze %344 : memref<1x!tpu.dma_semaphore, #tpu.memory_space<semaphore_mem>> -> memref<!tpu.dma_semaphore, #tpu.memory_space<semaphore_mem>>
      tpu.enqueue_dma source(%341 : memref<8x128xf32, #tpu.memory_space<any>>) target(%343 : memref<8x128xf32, #tpu.memory_space<vmem>>) target_semaphore(%345 : memref<!tpu.dma_semaphore, #tpu.memory_space<semaphore_mem>>)
    } else {
    }
    %c6_i32 = arith.constant 6 : i32
    %91 = arith.addi %0, %c6_i32 : i32
    %92 = arith.index_cast %91 : i32 to index
    %93 = memref.load %arg1[%92] : memref<8xi32, #tpu.memory_space<smem>>
    %c6_i32_54 = arith.constant 6 : i32
    %c6_i32_55 = arith.constant 6 : i32
    %c0_i32_56 = arith.constant 0 : i32
    %c0_i32_57 = arith.constant 0 : i32
    %94 = tpu.memref_slice %arg5[%93, %c0_i32_56, %c0_i32_57] : memref<16x8x128xf32, #tpu.memory_space<any>> -> memref<1x8x128xf32, #tpu.memory_space<any>>
    %95 = tpu.memref_squeeze %94 : memref<1x8x128xf32, #tpu.memory_space<any>> -> memref<8x128xf32, #tpu.memory_space<any>>
    %c0_i32_58 = arith.constant 0 : i32
    %c0_i32_59 = arith.constant 0 : i32
    %96 = tpu.memref_slice %arg7[%c6_i32_54, %c0_i32_58, %c0_i32_59] : memref<8x8x128xf32, #tpu.memory_space<vmem>> -> memref<1x8x128xf32, #tpu.memory_space<vmem>>
    %97 = tpu.memref_squeeze %96 : memref<1x8x128xf32, #tpu.memory_space<vmem>> -> memref<8x128xf32, #tpu.memory_space<vmem>>
    %98 = tpu.memref_slice %arg9[%c6_i32_55] : memref<8x!tpu.dma_semaphore, #tpu.memory_space<semaphore_mem>> -> memref<1x!tpu.dma_semaphore, #tpu.memory_space<semaphore_mem>>
    %99 = tpu.memref_squeeze %98 : memref<1x!tpu.dma_semaphore, #tpu.memory_space<semaphore_mem>> -> memref<!tpu.dma_semaphore, #tpu.memory_space<semaphore_mem>>
    tpu.enqueue_dma source(%95 : memref<8x128xf32, #tpu.memory_space<any>>) target(%97 : memref<8x128xf32, #tpu.memory_space<vmem>>) target_semaphore(%99 : memref<!tpu.dma_semaphore, #tpu.memory_space<semaphore_mem>>)
    %c6_i32_60 = arith.constant 6 : i32
    %100 = arith.addi %0, %c6_i32_60 : i32
    %101 = arith.index_cast %100 : i32 to index
    %102 = memref.load %arg4[%101] : memref<8xi32, #tpu.memory_space<smem>>
    %c0_i32_61 = arith.constant 0 : i32
    %103 = arith.cmpi ne, %102, %c0_i32_61 : i32
    %104 = arith.extui %103 : i1 to i32
    %c0_i32_62 = arith.constant 0 : i32
    %105 = arith.cmpi ne, %104, %c0_i32_62 : i32
    scf.if %105 {
      %c6_i32_224 = arith.constant 6 : i32
      %337 = arith.addi %0, %c6_i32_224 : i32
      %338 = arith.index_cast %337 : i32 to index
      %339 = memref.load %arg2[%338] : memref<8xi32, #tpu.memory_space<smem>>
      %c6_i32_225 = arith.constant 6 : i32
      %c6_i32_226 = arith.constant 6 : i32
      %c0_i32_227 = arith.constant 0 : i32
      %c0_i32_228 = arith.constant 0 : i32
      %340 = tpu.memref_slice %arg5[%339, %c0_i32_227, %c0_i32_228] : memref<16x8x128xf32, #tpu.memory_space<any>> -> memref<1x8x128xf32, #tpu.memory_space<any>>
      %341 = tpu.memref_squeeze %340 : memref<1x8x128xf32, #tpu.memory_space<any>> -> memref<8x128xf32, #tpu.memory_space<any>>
      %c0_i32_229 = arith.constant 0 : i32
      %c0_i32_230 = arith.constant 0 : i32
      %342 = tpu.memref_slice %arg8[%c6_i32_225, %c0_i32_229, %c0_i32_230] : memref<8x8x128xf32, #tpu.memory_space<vmem>> -> memref<1x8x128xf32, #tpu.memory_space<vmem>>
      %343 = tpu.memref_squeeze %342 : memref<1x8x128xf32, #tpu.memory_space<vmem>> -> memref<8x128xf32, #tpu.memory_space<vmem>>
      %344 = tpu.memref_slice %arg10[%c6_i32_226] : memref<8x!tpu.dma_semaphore, #tpu.memory_space<semaphore_mem>> -> memref<1x!tpu.dma_semaphore, #tpu.memory_space<semaphore_mem>>
      %345 = tpu.memref_squeeze %344 : memref<1x!tpu.dma_semaphore, #tpu.memory_space<semaphore_mem>> -> memref<!tpu.dma_semaphore, #tpu.memory_space<semaphore_mem>>
      tpu.enqueue_dma source(%341 : memref<8x128xf32, #tpu.memory_space<any>>) target(%343 : memref<8x128xf32, #tpu.memory_space<vmem>>) target_semaphore(%345 : memref<!tpu.dma_semaphore, #tpu.memory_space<semaphore_mem>>)
    } else {
    }
    %c7_i32 = arith.constant 7 : i32
    %106 = arith.addi %0, %c7_i32 : i32
    %107 = arith.index_cast %106 : i32 to index
    %108 = memref.load %arg1[%107] : memref<8xi32, #tpu.memory_space<smem>>
    %c7_i32_63 = arith.constant 7 : i32
    %c7_i32_64 = arith.constant 7 : i32
    %c0_i32_65 = arith.constant 0 : i32
    %c0_i32_66 = arith.constant 0 : i32
    %109 = tpu.memref_slice %arg5[%108, %c0_i32_65, %c0_i32_66] : memref<16x8x128xf32, #tpu.memory_space<any>> -> memref<1x8x128xf32, #tpu.memory_space<any>>
    %110 = tpu.memref_squeeze %109 : memref<1x8x128xf32, #tpu.memory_space<any>> -> memref<8x128xf32, #tpu.memory_space<any>>
    %c0_i32_67 = arith.constant 0 : i32
    %c0_i32_68 = arith.constant 0 : i32
    %111 = tpu.memref_slice %arg7[%c7_i32_63, %c0_i32_67, %c0_i32_68] : memref<8x8x128xf32, #tpu.memory_space<vmem>> -> memref<1x8x128xf32, #tpu.memory_space<vmem>>
    %112 = tpu.memref_squeeze %111 : memref<1x8x128xf32, #tpu.memory_space<vmem>> -> memref<8x128xf32, #tpu.memory_space<vmem>>
    %113 = tpu.memref_slice %arg9[%c7_i32_64] : memref<8x!tpu.dma_semaphore, #tpu.memory_space<semaphore_mem>> -> memref<1x!tpu.dma_semaphore, #tpu.memory_space<semaphore_mem>>
    %114 = tpu.memref_squeeze %113 : memref<1x!tpu.dma_semaphore, #tpu.memory_space<semaphore_mem>> -> memref<!tpu.dma_semaphore, #tpu.memory_space<semaphore_mem>>
    tpu.enqueue_dma source(%110 : memref<8x128xf32, #tpu.memory_space<any>>) target(%112 : memref<8x128xf32, #tpu.memory_space<vmem>>) target_semaphore(%114 : memref<!tpu.dma_semaphore, #tpu.memory_space<semaphore_mem>>)
    %c7_i32_69 = arith.constant 7 : i32
    %115 = arith.addi %0, %c7_i32_69 : i32
    %116 = arith.index_cast %115 : i32 to index
    %117 = memref.load %arg4[%116] : memref<8xi32, #tpu.memory_space<smem>>
    %c0_i32_70 = arith.constant 0 : i32
    %118 = arith.cmpi ne, %117, %c0_i32_70 : i32
    %119 = arith.extui %118 : i1 to i32
    %c0_i32_71 = arith.constant 0 : i32
    %120 = arith.cmpi ne, %119, %c0_i32_71 : i32
    scf.if %120 {
      %c7_i32_224 = arith.constant 7 : i32
      %337 = arith.addi %0, %c7_i32_224 : i32
      %338 = arith.index_cast %337 : i32 to index
      %339 = memref.load %arg2[%338] : memref<8xi32, #tpu.memory_space<smem>>
      %c7_i32_225 = arith.constant 7 : i32
      %c7_i32_226 = arith.constant 7 : i32
      %c0_i32_227 = arith.constant 0 : i32
      %c0_i32_228 = arith.constant 0 : i32
      %340 = tpu.memref_slice %arg5[%339, %c0_i32_227, %c0_i32_228] : memref<16x8x128xf32, #tpu.memory_space<any>> -> memref<1x8x128xf32, #tpu.memory_space<any>>
      %341 = tpu.memref_squeeze %340 : memref<1x8x128xf32, #tpu.memory_space<any>> -> memref<8x128xf32, #tpu.memory_space<any>>
      %c0_i32_229 = arith.constant 0 : i32
      %c0_i32_230 = arith.constant 0 : i32
      %342 = tpu.memref_slice %arg8[%c7_i32_225, %c0_i32_229, %c0_i32_230] : memref<8x8x128xf32, #tpu.memory_space<vmem>> -> memref<1x8x128xf32, #tpu.memory_space<vmem>>
      %343 = tpu.memref_squeeze %342 : memref<1x8x128xf32, #tpu.memory_space<vmem>> -> memref<8x128xf32, #tpu.memory_space<vmem>>
      %344 = tpu.memref_slice %arg10[%c7_i32_226] : memref<8x!tpu.dma_semaphore, #tpu.memory_space<semaphore_mem>> -> memref<1x!tpu.dma_semaphore, #tpu.memory_space<semaphore_mem>>
      %345 = tpu.memref_squeeze %344 : memref<1x!tpu.dma_semaphore, #tpu.memory_space<semaphore_mem>> -> memref<!tpu.dma_semaphore, #tpu.memory_space<semaphore_mem>>
      tpu.enqueue_dma source(%341 : memref<8x128xf32, #tpu.memory_space<any>>) target(%343 : memref<8x128xf32, #tpu.memory_space<vmem>>) target_semaphore(%345 : memref<!tpu.dma_semaphore, #tpu.memory_space<semaphore_mem>>)
    } else {
    }
    %c0_i32_72 = arith.constant 0 : i32
    %c0_i32_73 = arith.constant 0 : i32
    %c0_i32_74 = arith.constant 0 : i32
    %c0_i32_75 = arith.constant 0 : i32
    %c0_i32_76 = arith.constant 0 : i32
    %121 = tpu.memref_slice %arg5[%c0_i32_72, %c0_i32_75, %c0_i32_76] : memref<16x8x128xf32, #tpu.memory_space<any>> -> memref<1x8x128xf32, #tpu.memory_space<any>>
    %122 = tpu.memref_squeeze %121 : memref<1x8x128xf32, #tpu.memory_space<any>> -> memref<8x128xf32, #tpu.memory_space<any>>
    %c0_i32_77 = arith.constant 0 : i32
    %c0_i32_78 = arith.constant 0 : i32
    %123 = tpu.memref_slice %arg7[%c0_i32_73, %c0_i32_77, %c0_i32_78] : memref<8x8x128xf32, #tpu.memory_space<vmem>> -> memref<1x8x128xf32, #tpu.memory_space<vmem>>
    %124 = tpu.memref_squeeze %123 : memref<1x8x128xf32, #tpu.memory_space<vmem>> -> memref<8x128xf32, #tpu.memory_space<vmem>>
    %125 = tpu.memref_slice %arg9[%c0_i32_74] : memref<8x!tpu.dma_semaphore, #tpu.memory_space<semaphore_mem>> -> memref<1x!tpu.dma_semaphore, #tpu.memory_space<semaphore_mem>>
    %126 = tpu.memref_squeeze %125 : memref<1x!tpu.dma_semaphore, #tpu.memory_space<semaphore_mem>> -> memref<!tpu.dma_semaphore, #tpu.memory_space<semaphore_mem>>
    tpu.wait_dma2 semaphore(%126 : memref<!tpu.dma_semaphore, #tpu.memory_space<semaphore_mem>>) src(%122 : memref<8x128xf32, #tpu.memory_space<any>>) dst(%124 : memref<8x128xf32, #tpu.memory_space<vmem>>)
    %c0_i32_79 = arith.constant 0 : i32
    %127 = arith.addi %0, %c0_i32_79 : i32
    %128 = arith.index_cast %127 : i32 to index
    %129 = memref.load %arg4[%128] : memref<8xi32, #tpu.memory_space<smem>>
    %c0_i32_80 = arith.constant 0 : i32
    %130 = arith.cmpi ne, %129, %c0_i32_80 : i32
    %131 = arith.extui %130 : i1 to i32
    %c0_i32_81 = arith.constant 0 : i32
    %132 = arith.cmpi ne, %131, %c0_i32_81 : i32
    scf.if %132 {
      %c0_i32_224 = arith.constant 0 : i32
      %c0_i32_225 = arith.constant 0 : i32
      %c0_i32_226 = arith.constant 0 : i32
      %c0_i32_227 = arith.constant 0 : i32
      %c0_i32_228 = arith.constant 0 : i32
      %337 = tpu.memref_slice %arg5[%c0_i32_224, %c0_i32_227, %c0_i32_228] : memref<16x8x128xf32, #tpu.memory_space<any>> -> memref<1x8x128xf32, #tpu.memory_space<any>>
      %338 = tpu.memref_squeeze %337 : memref<1x8x128xf32, #tpu.memory_space<any>> -> memref<8x128xf32, #tpu.memory_space<any>>
      %c0_i32_229 = arith.constant 0 : i32
      %c0_i32_230 = arith.constant 0 : i32
      %339 = tpu.memref_slice %arg8[%c0_i32_225, %c0_i32_229, %c0_i32_230] : memref<8x8x128xf32, #tpu.memory_space<vmem>> -> memref<1x8x128xf32, #tpu.memory_space<vmem>>
      %340 = tpu.memref_squeeze %339 : memref<1x8x128xf32, #tpu.memory_space<vmem>> -> memref<8x128xf32, #tpu.memory_space<vmem>>
      %341 = tpu.memref_slice %arg10[%c0_i32_226] : memref<8x!tpu.dma_semaphore, #tpu.memory_space<semaphore_mem>> -> memref<1x!tpu.dma_semaphore, #tpu.memory_space<semaphore_mem>>
      %342 = tpu.memref_squeeze %341 : memref<1x!tpu.dma_semaphore, #tpu.memory_space<semaphore_mem>> -> memref<!tpu.dma_semaphore, #tpu.memory_space<semaphore_mem>>
      tpu.wait_dma2 semaphore(%342 : memref<!tpu.dma_semaphore, #tpu.memory_space<semaphore_mem>>) src(%338 : memref<8x128xf32, #tpu.memory_space<any>>) dst(%340 : memref<8x128xf32, #tpu.memory_space<vmem>>)
    } else {
    }
    %c0_i32_82 = arith.constant 0 : i32
    %133 = arith.addi %0, %c0_i32_82 : i32
    %134 = arith.index_cast %133 : i32 to index
    %135 = memref.load %arg3[%134] : memref<8xf32, #tpu.memory_space<smem>>
    %c0 = arith.constant 0 : index
    %c0_83 = arith.constant 0 : index
    %c0_84 = arith.constant 0 : index
    %136 = vector.load %arg7[%c0, %c0_83, %c0_84] : memref<8x8x128xf32, #tpu.memory_space<vmem>>, vector<1x8x128xf32>
    %137 = vector.shape_cast %136 : vector<1x8x128xf32> to vector<8x128xf32>
    %c0_85 = arith.constant 0 : index
    %c0_86 = arith.constant 0 : index
    %c0_87 = arith.constant 0 : index
    %138 = vector.load %arg8[%c0_85, %c0_86, %c0_87] : memref<8x8x128xf32, #tpu.memory_space<vmem>>, vector<1x8x128xf32>
    %139 = vector.shape_cast %138 : vector<1x8x128xf32> to vector<8x128xf32>
    %140 = arith.subf %139, %137 : vector<8x128xf32>
    %141 = vector.broadcast %135 : f32 to vector<8x128xf32>
    %142 = arith.mulf %141, %140 : vector<8x128xf32>
    %143 = arith.addf %137, %142 : vector<8x128xf32>
    %144 = arith.select %130, %143, %137 : vector<8x128xf32>
    %c0_88 = arith.constant 0 : index
    %c0_89 = arith.constant 0 : index
    %c0_90 = arith.constant 0 : index
    %145 = vector.load %arg6[%c0_88, %c0_89, %c0_90] : memref<8x8x128xf32, #tpu.memory_space<vmem>>, vector<1x8x128xf32>
    %146 = vector.shape_cast %145 : vector<1x8x128xf32> to vector<8x128xf32>
    %147 = vector.shape_cast %144 : vector<8x128xf32> to vector<1x8x128xf32>
    tpu.vector_store %arg6[%c0_88, %c0_89, %c0_90], %147 {strides = array<i32>} : memref<8x8x128xf32, #tpu.memory_space<vmem>>, vector<1x8x128xf32>,
    %c0_i32_91 = arith.constant 0 : i32
    %c1_i32_92 = arith.constant 1 : i32
    %c1_i32_93 = arith.constant 1 : i32
    %c0_i32_94 = arith.constant 0 : i32
    %c0_i32_95 = arith.constant 0 : i32
    %148 = tpu.memref_slice %arg5[%c0_i32_91, %c0_i32_94, %c0_i32_95] : memref<16x8x128xf32, #tpu.memory_space<any>> -> memref<1x8x128xf32, #tpu.memory_space<any>>
    %149 = tpu.memref_squeeze %148 : memref<1x8x128xf32, #tpu.memory_space<any>> -> memref<8x128xf32, #tpu.memory_space<any>>
    %c0_i32_96 = arith.constant 0 : i32
    %c0_i32_97 = arith.constant 0 : i32
    %150 = tpu.memref_slice %arg7[%c1_i32_92, %c0_i32_96, %c0_i32_97] : memref<8x8x128xf32, #tpu.memory_space<vmem>> -> memref<1x8x128xf32, #tpu.memory_space<vmem>>
    %151 = tpu.memref_squeeze %150 : memref<1x8x128xf32, #tpu.memory_space<vmem>> -> memref<8x128xf32, #tpu.memory_space<vmem>>
    %152 = tpu.memref_slice %arg9[%c1_i32_93] : memref<8x!tpu.dma_semaphore, #tpu.memory_space<semaphore_mem>> -> memref<1x!tpu.dma_semaphore, #tpu.memory_space<semaphore_mem>>
    %153 = tpu.memref_squeeze %152 : memref<1x!tpu.dma_semaphore, #tpu.memory_space<semaphore_mem>> -> memref<!tpu.dma_semaphore, #tpu.memory_space<semaphore_mem>>
    tpu.wait_dma2 semaphore(%153 : memref<!tpu.dma_semaphore, #tpu.memory_space<semaphore_mem>>) src(%149 : memref<8x128xf32, #tpu.memory_space<any>>) dst(%151 : memref<8x128xf32, #tpu.memory_space<vmem>>)
    %c1_i32_98 = arith.constant 1 : i32
    %154 = arith.addi %0, %c1_i32_98 : i32
    %155 = arith.index_cast %154 : i32 to index
    %156 = memref.load %arg4[%155] : memref<8xi32, #tpu.memory_space<smem>>
    %c0_i32_99 = arith.constant 0 : i32
    %157 = arith.cmpi ne, %156, %c0_i32_99 : i32
    %158 = arith.extui %157 : i1 to i32
    %c0_i32_100 = arith.constant 0 : i32
    %159 = arith.cmpi ne, %158, %c0_i32_100 : i32
    scf.if %159 {
      %c0_i32_224 = arith.constant 0 : i32
      %c1_i32_225 = arith.constant 1 : i32
      %c1_i32_226 = arith.constant 1 : i32
      %c0_i32_227 = arith.constant 0 : i32
      %c0_i32_228 = arith.constant 0 : i32
      %337 = tpu.memref_slice %arg5[%c0_i32_224, %c0_i32_227, %c0_i32_228] : memref<16x8x128xf32, #tpu.memory_space<any>> -> memref<1x8x128xf32, #tpu.memory_space<any>>
      %338 = tpu.memref_squeeze %337 : memref<1x8x128xf32, #tpu.memory_space<any>> -> memref<8x128xf32, #tpu.memory_space<any>>
      %c0_i32_229 = arith.constant 0 : i32
      %c0_i32_230 = arith.constant 0 : i32
      %339 = tpu.memref_slice %arg8[%c1_i32_225, %c0_i32_229, %c0_i32_230] : memref<8x8x128xf32, #tpu.memory_space<vmem>> -> memref<1x8x128xf32, #tpu.memory_space<vmem>>
      %340 = tpu.memref_squeeze %339 : memref<1x8x128xf32, #tpu.memory_space<vmem>> -> memref<8x128xf32, #tpu.memory_space<vmem>>
      %341 = tpu.memref_slice %arg10[%c1_i32_226] : memref<8x!tpu.dma_semaphore, #tpu.memory_space<semaphore_mem>> -> memref<1x!tpu.dma_semaphore, #tpu.memory_space<semaphore_mem>>
      %342 = tpu.memref_squeeze %341 : memref<1x!tpu.dma_semaphore, #tpu.memory_space<semaphore_mem>> -> memref<!tpu.dma_semaphore, #tpu.memory_space<semaphore_mem>>
      tpu.wait_dma2 semaphore(%342 : memref<!tpu.dma_semaphore, #tpu.memory_space<semaphore_mem>>) src(%338 : memref<8x128xf32, #tpu.memory_space<any>>) dst(%340 : memref<8x128xf32, #tpu.memory_space<vmem>>)
    } else {
    }
    %c1_i32_101 = arith.constant 1 : i32
    %160 = arith.addi %0, %c1_i32_101 : i32
    %161 = arith.index_cast %160 : i32 to index
    %162 = memref.load %arg3[%161] : memref<8xf32, #tpu.memory_space<smem>>
    %c1 = arith.constant 1 : index
    %c0_102 = arith.constant 0 : index
    %c0_103 = arith.constant 0 : index
    %163 = vector.load %arg7[%c1, %c0_102, %c0_103] : memref<8x8x128xf32, #tpu.memory_space<vmem>>, vector<1x8x128xf32>
    %164 = vector.shape_cast %163 : vector<1x8x128xf32> to vector<8x128xf32>
    %c1_104 = arith.constant 1 : index
    %c0_105 = arith.constant 0 : index
    %c0_106 = arith.constant 0 : index
    %165 = vector.load %arg8[%c1_104, %c0_105, %c0_106] : memref<8x8x128xf32, #tpu.memory_space<vmem>>, vector<1x8x128xf32>
    %166 = vector.shape_cast %165 : vector<1x8x128xf32> to vector<8x128xf32>
    %167 = arith.subf %166, %164 : vector<8x128xf32>
    %168 = vector.broadcast %162 : f32 to vector<8x128xf32>
    %169 = arith.mulf %168, %167 : vector<8x128xf32>
    %170 = arith.addf %164, %169 : vector<8x128xf32>
    %171 = arith.select %157, %170, %164 : vector<8x128xf32>
    %c1_107 = arith.constant 1 : index
    %c0_108 = arith.constant 0 : index
    %c0_109 = arith.constant 0 : index
    %172 = vector.load %arg6[%c1_107, %c0_108, %c0_109] : memref<8x8x128xf32, #tpu.memory_space<vmem>>, vector<1x8x128xf32>
    %173 = vector.shape_cast %172 : vector<1x8x128xf32> to vector<8x128xf32>
    %174 = vector.shape_cast %171 : vector<8x128xf32> to vector<1x8x128xf32>
    tpu.vector_store %arg6[%c1_107, %c0_108, %c0_109], %174 {strides = array<i32>} : memref<8x8x128xf32, #tpu.memory_space<vmem>>, vector<1x8x128xf32>,
    %c0_i32_110 = arith.constant 0 : i32
    %c2_i32_111 = arith.constant 2 : i32
    %c2_i32_112 = arith.constant 2 : i32
    %c0_i32_113 = arith.constant 0 : i32
    %c0_i32_114 = arith.constant 0 : i32
    %175 = tpu.memref_slice %arg5[%c0_i32_110, %c0_i32_113, %c0_i32_114] : memref<16x8x128xf32, #tpu.memory_space<any>> -> memref<1x8x128xf32, #tpu.memory_space<any>>
    %176 = tpu.memref_squeeze %175 : memref<1x8x128xf32, #tpu.memory_space<any>> -> memref<8x128xf32, #tpu.memory_space<any>>
    %c0_i32_115 = arith.constant 0 : i32
    %c0_i32_116 = arith.constant 0 : i32
    %177 = tpu.memref_slice %arg7[%c2_i32_111, %c0_i32_115, %c0_i32_116] : memref<8x8x128xf32, #tpu.memory_space<vmem>> -> memref<1x8x128xf32, #tpu.memory_space<vmem>>
    %178 = tpu.memref_squeeze %177 : memref<1x8x128xf32, #tpu.memory_space<vmem>> -> memref<8x128xf32, #tpu.memory_space<vmem>>
    %179 = tpu.memref_slice %arg9[%c2_i32_112] : memref<8x!tpu.dma_semaphore, #tpu.memory_space<semaphore_mem>> -> memref<1x!tpu.dma_semaphore, #tpu.memory_space<semaphore_mem>>
    %180 = tpu.memref_squeeze %179 : memref<1x!tpu.dma_semaphore, #tpu.memory_space<semaphore_mem>> -> memref<!tpu.dma_semaphore, #tpu.memory_space<semaphore_mem>>
    tpu.wait_dma2 semaphore(%180 : memref<!tpu.dma_semaphore, #tpu.memory_space<semaphore_mem>>) src(%176 : memref<8x128xf32, #tpu.memory_space<any>>) dst(%178 : memref<8x128xf32, #tpu.memory_space<vmem>>)
    %c2_i32_117 = arith.constant 2 : i32
    %181 = arith.addi %0, %c2_i32_117 : i32
    %182 = arith.index_cast %181 : i32 to index
    %183 = memref.load %arg4[%182] : memref<8xi32, #tpu.memory_space<smem>>
    %c0_i32_118 = arith.constant 0 : i32
    %184 = arith.cmpi ne, %183, %c0_i32_118 : i32
    %185 = arith.extui %184 : i1 to i32
    %c0_i32_119 = arith.constant 0 : i32
    %186 = arith.cmpi ne, %185, %c0_i32_119 : i32
    scf.if %186 {
      %c0_i32_224 = arith.constant 0 : i32
      %c2_i32_225 = arith.constant 2 : i32
      %c2_i32_226 = arith.constant 2 : i32
      %c0_i32_227 = arith.constant 0 : i32
      %c0_i32_228 = arith.constant 0 : i32
      %337 = tpu.memref_slice %arg5[%c0_i32_224, %c0_i32_227, %c0_i32_228] : memref<16x8x128xf32, #tpu.memory_space<any>> -> memref<1x8x128xf32, #tpu.memory_space<any>>
      %338 = tpu.memref_squeeze %337 : memref<1x8x128xf32, #tpu.memory_space<any>> -> memref<8x128xf32, #tpu.memory_space<any>>
      %c0_i32_229 = arith.constant 0 : i32
      %c0_i32_230 = arith.constant 0 : i32
      %339 = tpu.memref_slice %arg8[%c2_i32_225, %c0_i32_229, %c0_i32_230] : memref<8x8x128xf32, #tpu.memory_space<vmem>> -> memref<1x8x128xf32, #tpu.memory_space<vmem>>
      %340 = tpu.memref_squeeze %339 : memref<1x8x128xf32, #tpu.memory_space<vmem>> -> memref<8x128xf32, #tpu.memory_space<vmem>>
      %341 = tpu.memref_slice %arg10[%c2_i32_226] : memref<8x!tpu.dma_semaphore, #tpu.memory_space<semaphore_mem>> -> memref<1x!tpu.dma_semaphore, #tpu.memory_space<semaphore_mem>>
      %342 = tpu.memref_squeeze %341 : memref<1x!tpu.dma_semaphore, #tpu.memory_space<semaphore_mem>> -> memref<!tpu.dma_semaphore, #tpu.memory_space<semaphore_mem>>
      tpu.wait_dma2 semaphore(%342 : memref<!tpu.dma_semaphore, #tpu.memory_space<semaphore_mem>>) src(%338 : memref<8x128xf32, #tpu.memory_space<any>>) dst(%340 : memref<8x128xf32, #tpu.memory_space<vmem>>)
    } else {
    }
    %c2_i32_120 = arith.constant 2 : i32
    %187 = arith.addi %0, %c2_i32_120 : i32
    %188 = arith.index_cast %187 : i32 to index
    %189 = memref.load %arg3[%188] : memref<8xf32, #tpu.memory_space<smem>>
    %c2 = arith.constant 2 : index
    %c0_121 = arith.constant 0 : index
    %c0_122 = arith.constant 0 : index
    %190 = vector.load %arg7[%c2, %c0_121, %c0_122] : memref<8x8x128xf32, #tpu.memory_space<vmem>>, vector<1x8x128xf32>
    %191 = vector.shape_cast %190 : vector<1x8x128xf32> to vector<8x128xf32>
    %c2_123 = arith.constant 2 : index
    %c0_124 = arith.constant 0 : index
    %c0_125 = arith.constant 0 : index
    %192 = vector.load %arg8[%c2_123, %c0_124, %c0_125] : memref<8x8x128xf32, #tpu.memory_space<vmem>>, vector<1x8x128xf32>
    %193 = vector.shape_cast %192 : vector<1x8x128xf32> to vector<8x128xf32>
    %194 = arith.subf %193, %191 : vector<8x128xf32>
    %195 = vector.broadcast %189 : f32 to vector<8x128xf32>
    %196 = arith.mulf %195, %194 : vector<8x128xf32>
    %197 = arith.addf %191, %196 : vector<8x128xf32>
    %198 = arith.select %184, %197, %191 : vector<8x128xf32>
    %c2_126 = arith.constant 2 : index
    %c0_127 = arith.constant 0 : index
    %c0_128 = arith.constant 0 : index
    %199 = vector.load %arg6[%c2_126, %c0_127, %c0_128] : memref<8x8x128xf32, #tpu.memory_space<vmem>>, vector<1x8x128xf32>
    %200 = vector.shape_cast %199 : vector<1x8x128xf32> to vector<8x128xf32>
    %201 = vector.shape_cast %198 : vector<8x128xf32> to vector<1x8x128xf32>
    tpu.vector_store %arg6[%c2_126, %c0_127, %c0_128], %201 {strides = array<i32>} : memref<8x8x128xf32, #tpu.memory_space<vmem>>, vector<1x8x128xf32>,
    %c0_i32_129 = arith.constant 0 : i32
    %c3_i32_130 = arith.constant 3 : i32
    %c3_i32_131 = arith.constant 3 : i32
    %c0_i32_132 = arith.constant 0 : i32
    %c0_i32_133 = arith.constant 0 : i32
    %202 = tpu.memref_slice %arg5[%c0_i32_129, %c0_i32_132, %c0_i32_133] : memref<16x8x128xf32, #tpu.memory_space<any>> -> memref<1x8x128xf32, #tpu.memory_space<any>>
    %203 = tpu.memref_squeeze %202 : memref<1x8x128xf32, #tpu.memory_space<any>> -> memref<8x128xf32, #tpu.memory_space<any>>
    %c0_i32_134 = arith.constant 0 : i32
    %c0_i32_135 = arith.constant 0 : i32
    %204 = tpu.memref_slice %arg7[%c3_i32_130, %c0_i32_134, %c0_i32_135] : memref<8x8x128xf32, #tpu.memory_space<vmem>> -> memref<1x8x128xf32, #tpu.memory_space<vmem>>
    %205 = tpu.memref_squeeze %204 : memref<1x8x128xf32, #tpu.memory_space<vmem>> -> memref<8x128xf32, #tpu.memory_space<vmem>>
    %206 = tpu.memref_slice %arg9[%c3_i32_131] : memref<8x!tpu.dma_semaphore, #tpu.memory_space<semaphore_mem>> -> memref<1x!tpu.dma_semaphore, #tpu.memory_space<semaphore_mem>>
    %207 = tpu.memref_squeeze %206 : memref<1x!tpu.dma_semaphore, #tpu.memory_space<semaphore_mem>> -> memref<!tpu.dma_semaphore, #tpu.memory_space<semaphore_mem>>
    tpu.wait_dma2 semaphore(%207 : memref<!tpu.dma_semaphore, #tpu.memory_space<semaphore_mem>>) src(%203 : memref<8x128xf32, #tpu.memory_space<any>>) dst(%205 : memref<8x128xf32, #tpu.memory_space<vmem>>)
    %c3_i32_136 = arith.constant 3 : i32
    %208 = arith.addi %0, %c3_i32_136 : i32
    %209 = arith.index_cast %208 : i32 to index
    %210 = memref.load %arg4[%209] : memref<8xi32, #tpu.memory_space<smem>>
    %c0_i32_137 = arith.constant 0 : i32
    %211 = arith.cmpi ne, %210, %c0_i32_137 : i32
    %212 = arith.extui %211 : i1 to i32
    %c0_i32_138 = arith.constant 0 : i32
    %213 = arith.cmpi ne, %212, %c0_i32_138 : i32
    scf.if %213 {
      %c0_i32_224 = arith.constant 0 : i32
      %c3_i32_225 = arith.constant 3 : i32
      %c3_i32_226 = arith.constant 3 : i32
      %c0_i32_227 = arith.constant 0 : i32
      %c0_i32_228 = arith.constant 0 : i32
      %337 = tpu.memref_slice %arg5[%c0_i32_224, %c0_i32_227, %c0_i32_228] : memref<16x8x128xf32, #tpu.memory_space<any>> -> memref<1x8x128xf32, #tpu.memory_space<any>>
      %338 = tpu.memref_squeeze %337 : memref<1x8x128xf32, #tpu.memory_space<any>> -> memref<8x128xf32, #tpu.memory_space<any>>
      %c0_i32_229 = arith.constant 0 : i32
      %c0_i32_230 = arith.constant 0 : i32
      %339 = tpu.memref_slice %arg8[%c3_i32_225, %c0_i32_229, %c0_i32_230] : memref<8x8x128xf32, #tpu.memory_space<vmem>> -> memref<1x8x128xf32, #tpu.memory_space<vmem>>
      %340 = tpu.memref_squeeze %339 : memref<1x8x128xf32, #tpu.memory_space<vmem>> -> memref<8x128xf32, #tpu.memory_space<vmem>>
      %341 = tpu.memref_slice %arg10[%c3_i32_226] : memref<8x!tpu.dma_semaphore, #tpu.memory_space<semaphore_mem>> -> memref<1x!tpu.dma_semaphore, #tpu.memory_space<semaphore_mem>>
      %342 = tpu.memref_squeeze %341 : memref<1x!tpu.dma_semaphore, #tpu.memory_space<semaphore_mem>> -> memref<!tpu.dma_semaphore, #tpu.memory_space<semaphore_mem>>
      tpu.wait_dma2 semaphore(%342 : memref<!tpu.dma_semaphore, #tpu.memory_space<semaphore_mem>>) src(%338 : memref<8x128xf32, #tpu.memory_space<any>>) dst(%340 : memref<8x128xf32, #tpu.memory_space<vmem>>)
    } else {
    }
    %c3_i32_139 = arith.constant 3 : i32
    %214 = arith.addi %0, %c3_i32_139 : i32
    %215 = arith.index_cast %214 : i32 to index
    %216 = memref.load %arg3[%215] : memref<8xf32, #tpu.memory_space<smem>>
    %c3 = arith.constant 3 : index
    %c0_140 = arith.constant 0 : index
    %c0_141 = arith.constant 0 : index
    %217 = vector.load %arg7[%c3, %c0_140, %c0_141] : memref<8x8x128xf32, #tpu.memory_space<vmem>>, vector<1x8x128xf32>
    %218 = vector.shape_cast %217 : vector<1x8x128xf32> to vector<8x128xf32>
    %c3_142 = arith.constant 3 : index
    %c0_143 = arith.constant 0 : index
    %c0_144 = arith.constant 0 : index
    %219 = vector.load %arg8[%c3_142, %c0_143, %c0_144] : memref<8x8x128xf32, #tpu.memory_space<vmem>>, vector<1x8x128xf32>
    %220 = vector.shape_cast %219 : vector<1x8x128xf32> to vector<8x128xf32>
    %221 = arith.subf %220, %218 : vector<8x128xf32>
    %222 = vector.broadcast %216 : f32 to vector<8x128xf32>
    %223 = arith.mulf %222, %221 : vector<8x128xf32>
    %224 = arith.addf %218, %223 : vector<8x128xf32>
    %225 = arith.select %211, %224, %218 : vector<8x128xf32>
    %c3_145 = arith.constant 3 : index
    %c0_146 = arith.constant 0 : index
    %c0_147 = arith.constant 0 : index
    %226 = vector.load %arg6[%c3_145, %c0_146, %c0_147] : memref<8x8x128xf32, #tpu.memory_space<vmem>>, vector<1x8x128xf32>
    %227 = vector.shape_cast %226 : vector<1x8x128xf32> to vector<8x128xf32>
    %228 = vector.shape_cast %225 : vector<8x128xf32> to vector<1x8x128xf32>
    tpu.vector_store %arg6[%c3_145, %c0_146, %c0_147], %228 {strides = array<i32>} : memref<8x8x128xf32, #tpu.memory_space<vmem>>, vector<1x8x128xf32>,
    %c0_i32_148 = arith.constant 0 : i32
    %c4_i32_149 = arith.constant 4 : i32
    %c4_i32_150 = arith.constant 4 : i32
    %c0_i32_151 = arith.constant 0 : i32
    %c0_i32_152 = arith.constant 0 : i32
    %229 = tpu.memref_slice %arg5[%c0_i32_148, %c0_i32_151, %c0_i32_152] : memref<16x8x128xf32, #tpu.memory_space<any>> -> memref<1x8x128xf32, #tpu.memory_space<any>>
    %230 = tpu.memref_squeeze %229 : memref<1x8x128xf32, #tpu.memory_space<any>> -> memref<8x128xf32, #tpu.memory_space<any>>
    %c0_i32_153 = arith.constant 0 : i32
    %c0_i32_154 = arith.constant 0 : i32
    %231 = tpu.memref_slice %arg7[%c4_i32_149, %c0_i32_153, %c0_i32_154] : memref<8x8x128xf32, #tpu.memory_space<vmem>> -> memref<1x8x128xf32, #tpu.memory_space<vmem>>
    %232 = tpu.memref_squeeze %231 : memref<1x8x128xf32, #tpu.memory_space<vmem>> -> memref<8x128xf32, #tpu.memory_space<vmem>>
    %233 = tpu.memref_slice %arg9[%c4_i32_150] : memref<8x!tpu.dma_semaphore, #tpu.memory_space<semaphore_mem>> -> memref<1x!tpu.dma_semaphore, #tpu.memory_space<semaphore_mem>>
    %234 = tpu.memref_squeeze %233 : memref<1x!tpu.dma_semaphore, #tpu.memory_space<semaphore_mem>> -> memref<!tpu.dma_semaphore, #tpu.memory_space<semaphore_mem>>
    tpu.wait_dma2 semaphore(%234 : memref<!tpu.dma_semaphore, #tpu.memory_space<semaphore_mem>>) src(%230 : memref<8x128xf32, #tpu.memory_space<any>>) dst(%232 : memref<8x128xf32, #tpu.memory_space<vmem>>)
    %c4_i32_155 = arith.constant 4 : i32
    %235 = arith.addi %0, %c4_i32_155 : i32
    %236 = arith.index_cast %235 : i32 to index
    %237 = memref.load %arg4[%236] : memref<8xi32, #tpu.memory_space<smem>>
    %c0_i32_156 = arith.constant 0 : i32
    %238 = arith.cmpi ne, %237, %c0_i32_156 : i32
    %239 = arith.extui %238 : i1 to i32
    %c0_i32_157 = arith.constant 0 : i32
    %240 = arith.cmpi ne, %239, %c0_i32_157 : i32
    scf.if %240 {
      %c0_i32_224 = arith.constant 0 : i32
      %c4_i32_225 = arith.constant 4 : i32
      %c4_i32_226 = arith.constant 4 : i32
      %c0_i32_227 = arith.constant 0 : i32
      %c0_i32_228 = arith.constant 0 : i32
      %337 = tpu.memref_slice %arg5[%c0_i32_224, %c0_i32_227, %c0_i32_228] : memref<16x8x128xf32, #tpu.memory_space<any>> -> memref<1x8x128xf32, #tpu.memory_space<any>>
      %338 = tpu.memref_squeeze %337 : memref<1x8x128xf32, #tpu.memory_space<any>> -> memref<8x128xf32, #tpu.memory_space<any>>
      %c0_i32_229 = arith.constant 0 : i32
      %c0_i32_230 = arith.constant 0 : i32
      %339 = tpu.memref_slice %arg8[%c4_i32_225, %c0_i32_229, %c0_i32_230] : memref<8x8x128xf32, #tpu.memory_space<vmem>> -> memref<1x8x128xf32, #tpu.memory_space<vmem>>
      %340 = tpu.memref_squeeze %339 : memref<1x8x128xf32, #tpu.memory_space<vmem>> -> memref<8x128xf32, #tpu.memory_space<vmem>>
      %341 = tpu.memref_slice %arg10[%c4_i32_226] : memref<8x!tpu.dma_semaphore, #tpu.memory_space<semaphore_mem>> -> memref<1x!tpu.dma_semaphore, #tpu.memory_space<semaphore_mem>>
      %342 = tpu.memref_squeeze %341 : memref<1x!tpu.dma_semaphore, #tpu.memory_space<semaphore_mem>> -> memref<!tpu.dma_semaphore, #tpu.memory_space<semaphore_mem>>
      tpu.wait_dma2 semaphore(%342 : memref<!tpu.dma_semaphore, #tpu.memory_space<semaphore_mem>>) src(%338 : memref<8x128xf32, #tpu.memory_space<any>>) dst(%340 : memref<8x128xf32, #tpu.memory_space<vmem>>)
    } else {
    }
    %c4_i32_158 = arith.constant 4 : i32
    %241 = arith.addi %0, %c4_i32_158 : i32
    %242 = arith.index_cast %241 : i32 to index
    %243 = memref.load %arg3[%242] : memref<8xf32, #tpu.memory_space<smem>>
    %c4 = arith.constant 4 : index
    %c0_159 = arith.constant 0 : index
    %c0_160 = arith.constant 0 : index
    %244 = vector.load %arg7[%c4, %c0_159, %c0_160] : memref<8x8x128xf32, #tpu.memory_space<vmem>>, vector<1x8x128xf32>
    %245 = vector.shape_cast %244 : vector<1x8x128xf32> to vector<8x128xf32>
    %c4_161 = arith.constant 4 : index
    %c0_162 = arith.constant 0 : index
    %c0_163 = arith.constant 0 : index
    %246 = vector.load %arg8[%c4_161, %c0_162, %c0_163] : memref<8x8x128xf32, #tpu.memory_space<vmem>>, vector<1x8x128xf32>
    %247 = vector.shape_cast %246 : vector<1x8x128xf32> to vector<8x128xf32>
    %248 = arith.subf %247, %245 : vector<8x128xf32>
    %249 = vector.broadcast %243 : f32 to vector<8x128xf32>
    %250 = arith.mulf %249, %248 : vector<8x128xf32>
    %251 = arith.addf %245, %250 : vector<8x128xf32>
    %252 = arith.select %238, %251, %245 : vector<8x128xf32>
    %c4_164 = arith.constant 4 : index
    %c0_165 = arith.constant 0 : index
    %c0_166 = arith.constant 0 : index
    %253 = vector.load %arg6[%c4_164, %c0_165, %c0_166] : memref<8x8x128xf32, #tpu.memory_space<vmem>>, vector<1x8x128xf32>
    %254 = vector.shape_cast %253 : vector<1x8x128xf32> to vector<8x128xf32>
    %255 = vector.shape_cast %252 : vector<8x128xf32> to vector<1x8x128xf32>
    tpu.vector_store %arg6[%c4_164, %c0_165, %c0_166], %255 {strides = array<i32>} : memref<8x8x128xf32, #tpu.memory_space<vmem>>, vector<1x8x128xf32>,
    %c0_i32_167 = arith.constant 0 : i32
    %c5_i32_168 = arith.constant 5 : i32
    %c5_i32_169 = arith.constant 5 : i32
    %c0_i32_170 = arith.constant 0 : i32
    %c0_i32_171 = arith.constant 0 : i32
    %256 = tpu.memref_slice %arg5[%c0_i32_167, %c0_i32_170, %c0_i32_171] : memref<16x8x128xf32, #tpu.memory_space<any>> -> memref<1x8x128xf32, #tpu.memory_space<any>>
    %257 = tpu.memref_squeeze %256 : memref<1x8x128xf32, #tpu.memory_space<any>> -> memref<8x128xf32, #tpu.memory_space<any>>
    %c0_i32_172 = arith.constant 0 : i32
    %c0_i32_173 = arith.constant 0 : i32
    %258 = tpu.memref_slice %arg7[%c5_i32_168, %c0_i32_172, %c0_i32_173] : memref<8x8x128xf32, #tpu.memory_space<vmem>> -> memref<1x8x128xf32, #tpu.memory_space<vmem>>
    %259 = tpu.memref_squeeze %258 : memref<1x8x128xf32, #tpu.memory_space<vmem>> -> memref<8x128xf32, #tpu.memory_space<vmem>>
    %260 = tpu.memref_slice %arg9[%c5_i32_169] : memref<8x!tpu.dma_semaphore, #tpu.memory_space<semaphore_mem>> -> memref<1x!tpu.dma_semaphore, #tpu.memory_space<semaphore_mem>>
    %261 = tpu.memref_squeeze %260 : memref<1x!tpu.dma_semaphore, #tpu.memory_space<semaphore_mem>> -> memref<!tpu.dma_semaphore, #tpu.memory_space<semaphore_mem>>
    tpu.wait_dma2 semaphore(%261 : memref<!tpu.dma_semaphore, #tpu.memory_space<semaphore_mem>>) src(%257 : memref<8x128xf32, #tpu.memory_space<any>>) dst(%259 : memref<8x128xf32, #tpu.memory_space<vmem>>)
    %c5_i32_174 = arith.constant 5 : i32
    %262 = arith.addi %0, %c5_i32_174 : i32
    %263 = arith.index_cast %262 : i32 to index
    %264 = memref.load %arg4[%263] : memref<8xi32, #tpu.memory_space<smem>>
    %c0_i32_175 = arith.constant 0 : i32
    %265 = arith.cmpi ne, %264, %c0_i32_175 : i32
    %266 = arith.extui %265 : i1 to i32
    %c0_i32_176 = arith.constant 0 : i32
    %267 = arith.cmpi ne, %266, %c0_i32_176 : i32
    scf.if %267 {
      %c0_i32_224 = arith.constant 0 : i32
      %c5_i32_225 = arith.constant 5 : i32
      %c5_i32_226 = arith.constant 5 : i32
      %c0_i32_227 = arith.constant 0 : i32
      %c0_i32_228 = arith.constant 0 : i32
      %337 = tpu.memref_slice %arg5[%c0_i32_224, %c0_i32_227, %c0_i32_228] : memref<16x8x128xf32, #tpu.memory_space<any>> -> memref<1x8x128xf32, #tpu.memory_space<any>>
      %338 = tpu.memref_squeeze %337 : memref<1x8x128xf32, #tpu.memory_space<any>> -> memref<8x128xf32, #tpu.memory_space<any>>
      %c0_i32_229 = arith.constant 0 : i32
      %c0_i32_230 = arith.constant 0 : i32
      %339 = tpu.memref_slice %arg8[%c5_i32_225, %c0_i32_229, %c0_i32_230] : memref<8x8x128xf32, #tpu.memory_space<vmem>> -> memref<1x8x128xf32, #tpu.memory_space<vmem>>
      %340 = tpu.memref_squeeze %339 : memref<1x8x128xf32, #tpu.memory_space<vmem>> -> memref<8x128xf32, #tpu.memory_space<vmem>>
      %341 = tpu.memref_slice %arg10[%c5_i32_226] : memref<8x!tpu.dma_semaphore, #tpu.memory_space<semaphore_mem>> -> memref<1x!tpu.dma_semaphore, #tpu.memory_space<semaphore_mem>>
      %342 = tpu.memref_squeeze %341 : memref<1x!tpu.dma_semaphore, #tpu.memory_space<semaphore_mem>> -> memref<!tpu.dma_semaphore, #tpu.memory_space<semaphore_mem>>
      tpu.wait_dma2 semaphore(%342 : memref<!tpu.dma_semaphore, #tpu.memory_space<semaphore_mem>>) src(%338 : memref<8x128xf32, #tpu.memory_space<any>>) dst(%340 : memref<8x128xf32, #tpu.memory_space<vmem>>)
    } else {
    }
    %c5_i32_177 = arith.constant 5 : i32
    %268 = arith.addi %0, %c5_i32_177 : i32
    %269 = arith.index_cast %268 : i32 to index
    %270 = memref.load %arg3[%269] : memref<8xf32, #tpu.memory_space<smem>>
    %c5 = arith.constant 5 : index
    %c0_178 = arith.constant 0 : index
    %c0_179 = arith.constant 0 : index
    %271 = vector.load %arg7[%c5, %c0_178, %c0_179] : memref<8x8x128xf32, #tpu.memory_space<vmem>>, vector<1x8x128xf32>
    %272 = vector.shape_cast %271 : vector<1x8x128xf32> to vector<8x128xf32>
    %c5_180 = arith.constant 5 : index
    %c0_181 = arith.constant 0 : index
    %c0_182 = arith.constant 0 : index
    %273 = vector.load %arg8[%c5_180, %c0_181, %c0_182] : memref<8x8x128xf32, #tpu.memory_space<vmem>>, vector<1x8x128xf32>
    %274 = vector.shape_cast %273 : vector<1x8x128xf32> to vector<8x128xf32>
    %275 = arith.subf %274, %272 : vector<8x128xf32>
    %276 = vector.broadcast %270 : f32 to vector<8x128xf32>
    %277 = arith.mulf %276, %275 : vector<8x128xf32>
    %278 = arith.addf %272, %277 : vector<8x128xf32>
    %279 = arith.select %265, %278, %272 : vector<8x128xf32>
    %c5_183 = arith.constant 5 : index
    %c0_184 = arith.constant 0 : index
    %c0_185 = arith.constant 0 : index
    %280 = vector.load %arg6[%c5_183, %c0_184, %c0_185] : memref<8x8x128xf32, #tpu.memory_space<vmem>>, vector<1x8x128xf32>
    %281 = vector.shape_cast %280 : vector<1x8x128xf32> to vector<8x128xf32>
    %282 = vector.shape_cast %279 : vector<8x128xf32> to vector<1x8x128xf32>
    tpu.vector_store %arg6[%c5_183, %c0_184, %c0_185], %282 {strides = array<i32>} : memref<8x8x128xf32, #tpu.memory_space<vmem>>, vector<1x8x128xf32>,
    %c0_i32_186 = arith.constant 0 : i32
    %c6_i32_187 = arith.constant 6 : i32
    %c6_i32_188 = arith.constant 6 : i32
    %c0_i32_189 = arith.constant 0 : i32
    %c0_i32_190 = arith.constant 0 : i32
    %283 = tpu.memref_slice %arg5[%c0_i32_186, %c0_i32_189, %c0_i32_190] : memref<16x8x128xf32, #tpu.memory_space<any>> -> memref<1x8x128xf32, #tpu.memory_space<any>>
    %284 = tpu.memref_squeeze %283 : memref<1x8x128xf32, #tpu.memory_space<any>> -> memref<8x128xf32, #tpu.memory_space<any>>
    %c0_i32_191 = arith.constant 0 : i32
    %c0_i32_192 = arith.constant 0 : i32
    %285 = tpu.memref_slice %arg7[%c6_i32_187, %c0_i32_191, %c0_i32_192] : memref<8x8x128xf32, #tpu.memory_space<vmem>> -> memref<1x8x128xf32, #tpu.memory_space<vmem>>
    %286 = tpu.memref_squeeze %285 : memref<1x8x128xf32, #tpu.memory_space<vmem>> -> memref<8x128xf32, #tpu.memory_space<vmem>>
    %287 = tpu.memref_slice %arg9[%c6_i32_188] : memref<8x!tpu.dma_semaphore, #tpu.memory_space<semaphore_mem>> -> memref<1x!tpu.dma_semaphore, #tpu.memory_space<semaphore_mem>>
    %288 = tpu.memref_squeeze %287 : memref<1x!tpu.dma_semaphore, #tpu.memory_space<semaphore_mem>> -> memref<!tpu.dma_semaphore, #tpu.memory_space<semaphore_mem>>
    tpu.wait_dma2 semaphore(%288 : memref<!tpu.dma_semaphore, #tpu.memory_space<semaphore_mem>>) src(%284 : memref<8x128xf32, #tpu.memory_space<any>>) dst(%286 : memref<8x128xf32, #tpu.memory_space<vmem>>)
    %c6_i32_193 = arith.constant 6 : i32
    %289 = arith.addi %0, %c6_i32_193 : i32
    %290 = arith.index_cast %289 : i32 to index
    %291 = memref.load %arg4[%290] : memref<8xi32, #tpu.memory_space<smem>>
    %c0_i32_194 = arith.constant 0 : i32
    %292 = arith.cmpi ne, %291, %c0_i32_194 : i32
    %293 = arith.extui %292 : i1 to i32
    %c0_i32_195 = arith.constant 0 : i32
    %294 = arith.cmpi ne, %293, %c0_i32_195 : i32
    scf.if %294 {
      %c0_i32_224 = arith.constant 0 : i32
      %c6_i32_225 = arith.constant 6 : i32
      %c6_i32_226 = arith.constant 6 : i32
      %c0_i32_227 = arith.constant 0 : i32
      %c0_i32_228 = arith.constant 0 : i32
      %337 = tpu.memref_slice %arg5[%c0_i32_224, %c0_i32_227, %c0_i32_228] : memref<16x8x128xf32, #tpu.memory_space<any>> -> memref<1x8x128xf32, #tpu.memory_space<any>>
      %338 = tpu.memref_squeeze %337 : memref<1x8x128xf32, #tpu.memory_space<any>> -> memref<8x128xf32, #tpu.memory_space<any>>
      %c0_i32_229 = arith.constant 0 : i32
      %c0_i32_230 = arith.constant 0 : i32
      %339 = tpu.memref_slice %arg8[%c6_i32_225, %c0_i32_229, %c0_i32_230] : memref<8x8x128xf32, #tpu.memory_space<vmem>> -> memref<1x8x128xf32, #tpu.memory_space<vmem>>
      %340 = tpu.memref_squeeze %339 : memref<1x8x128xf32, #tpu.memory_space<vmem>> -> memref<8x128xf32, #tpu.memory_space<vmem>>
      %341 = tpu.memref_slice %arg10[%c6_i32_226] : memref<8x!tpu.dma_semaphore, #tpu.memory_space<semaphore_mem>> -> memref<1x!tpu.dma_semaphore, #tpu.memory_space<semaphore_mem>>
      %342 = tpu.memref_squeeze %341 : memref<1x!tpu.dma_semaphore, #tpu.memory_space<semaphore_mem>> -> memref<!tpu.dma_semaphore, #tpu.memory_space<semaphore_mem>>
      tpu.wait_dma2 semaphore(%342 : memref<!tpu.dma_semaphore, #tpu.memory_space<semaphore_mem>>) src(%338 : memref<8x128xf32, #tpu.memory_space<any>>) dst(%340 : memref<8x128xf32, #tpu.memory_space<vmem>>)
    } else {
    }
    %c6_i32_196 = arith.constant 6 : i32
    %295 = arith.addi %0, %c6_i32_196 : i32
    %296 = arith.index_cast %295 : i32 to index
    %297 = memref.load %arg3[%296] : memref<8xf32, #tpu.memory_space<smem>>
    %c6 = arith.constant 6 : index
    %c0_197 = arith.constant 0 : index
    %c0_198 = arith.constant 0 : index
    %298 = vector.load %arg7[%c6, %c0_197, %c0_198] : memref<8x8x128xf32, #tpu.memory_space<vmem>>, vector<1x8x128xf32>
    %299 = vector.shape_cast %298 : vector<1x8x128xf32> to vector<8x128xf32>
    %c6_199 = arith.constant 6 : index
    %c0_200 = arith.constant 0 : index
    %c0_201 = arith.constant 0 : index
    %300 = vector.load %arg8[%c6_199, %c0_200, %c0_201] : memref<8x8x128xf32, #tpu.memory_space<vmem>>, vector<1x8x128xf32>
    %301 = vector.shape_cast %300 : vector<1x8x128xf32> to vector<8x128xf32>
    %302 = arith.subf %301, %299 : vector<8x128xf32>
    %303 = vector.broadcast %297 : f32 to vector<8x128xf32>
    %304 = arith.mulf %303, %302 : vector<8x128xf32>
    %305 = arith.addf %299, %304 : vector<8x128xf32>
    %306 = arith.select %292, %305, %299 : vector<8x128xf32>
    %c6_202 = arith.constant 6 : index
    %c0_203 = arith.constant 0 : index
    %c0_204 = arith.constant 0 : index
    %307 = vector.load %arg6[%c6_202, %c0_203, %c0_204] : memref<8x8x128xf32, #tpu.memory_space<vmem>>, vector<1x8x128xf32>
    %308 = vector.shape_cast %307 : vector<1x8x128xf32> to vector<8x128xf32>
    %309 = vector.shape_cast %306 : vector<8x128xf32> to vector<1x8x128xf32>
    tpu.vector_store %arg6[%c6_202, %c0_203, %c0_204], %309 {strides = array<i32>} : memref<8x8x128xf32, #tpu.memory_space<vmem>>, vector<1x8x128xf32>,
    %c0_i32_205 = arith.constant 0 : i32
    %c7_i32_206 = arith.constant 7 : i32
    %c7_i32_207 = arith.constant 7 : i32
    %c0_i32_208 = arith.constant 0 : i32
    %c0_i32_209 = arith.constant 0 : i32
    %310 = tpu.memref_slice %arg5[%c0_i32_205, %c0_i32_208, %c0_i32_209] : memref<16x8x128xf32, #tpu.memory_space<any>> -> memref<1x8x128xf32, #tpu.memory_space<any>>
    %311 = tpu.memref_squeeze %310 : memref<1x8x128xf32, #tpu.memory_space<any>> -> memref<8x128xf32, #tpu.memory_space<any>>
    %c0_i32_210 = arith.constant 0 : i32
    %c0_i32_211 = arith.constant 0 : i32
    %312 = tpu.memref_slice %arg7[%c7_i32_206, %c0_i32_210, %c0_i32_211] : memref<8x8x128xf32, #tpu.memory_space<vmem>> -> memref<1x8x128xf32, #tpu.memory_space<vmem>>
    %313 = tpu.memref_squeeze %312 : memref<1x8x128xf32, #tpu.memory_space<vmem>> -> memref<8x128xf32, #tpu.memory_space<vmem>>
    %314 = tpu.memref_slice %arg9[%c7_i32_207] : memref<8x!tpu.dma_semaphore, #tpu.memory_space<semaphore_mem>> -> memref<1x!tpu.dma_semaphore, #tpu.memory_space<semaphore_mem>>
    %315 = tpu.memref_squeeze %314 : memref<1x!tpu.dma_semaphore, #tpu.memory_space<semaphore_mem>> -> memref<!tpu.dma_semaphore, #tpu.memory_space<semaphore_mem>>
    tpu.wait_dma2 semaphore(%315 : memref<!tpu.dma_semaphore, #tpu.memory_space<semaphore_mem>>) src(%311 : memref<8x128xf32, #tpu.memory_space<any>>) dst(%313 : memref<8x128xf32, #tpu.memory_space<vmem>>)
    %c7_i32_212 = arith.constant 7 : i32
    %316 = arith.addi %0, %c7_i32_212 : i32
    %317 = arith.index_cast %316 : i32 to index
    %318 = memref.load %arg4[%317] : memref<8xi32, #tpu.memory_space<smem>>
    %c0_i32_213 = arith.constant 0 : i32
    %319 = arith.cmpi ne, %318, %c0_i32_213 : i32
    %320 = arith.extui %319 : i1 to i32
    %c0_i32_214 = arith.constant 0 : i32
    %321 = arith.cmpi ne, %320, %c0_i32_214 : i32
    scf.if %321 {
      %c0_i32_224 = arith.constant 0 : i32
      %c7_i32_225 = arith.constant 7 : i32
      %c7_i32_226 = arith.constant 7 : i32
      %c0_i32_227 = arith.constant 0 : i32
      %c0_i32_228 = arith.constant 0 : i32
      %337 = tpu.memref_slice %arg5[%c0_i32_224, %c0_i32_227, %c0_i32_228] : memref<16x8x128xf32, #tpu.memory_space<any>> -> memref<1x8x128xf32, #tpu.memory_space<any>>
      %338 = tpu.memref_squeeze %337 : memref<1x8x128xf32, #tpu.memory_space<any>> -> memref<8x128xf32, #tpu.memory_space<any>>
      %c0_i32_229 = arith.constant 0 : i32
      %c0_i32_230 = arith.constant 0 : i32
      %339 = tpu.memref_slice %arg8[%c7_i32_225, %c0_i32_229, %c0_i32_230] : memref<8x8x128xf32, #tpu.memory_space<vmem>> -> memref<1x8x128xf32, #tpu.memory_space<vmem>>
      %340 = tpu.memref_squeeze %339 : memref<1x8x128xf32, #tpu.memory_space<vmem>> -> memref<8x128xf32, #tpu.memory_space<vmem>>
      %341 = tpu.memref_slice %arg10[%c7_i32_226] : memref<8x!tpu.dma_semaphore, #tpu.memory_space<semaphore_mem>> -> memref<1x!tpu.dma_semaphore, #tpu.memory_space<semaphore_mem>>
      %342 = tpu.memref_squeeze %341 : memref<1x!tpu.dma_semaphore, #tpu.memory_space<semaphore_mem>> -> memref<!tpu.dma_semaphore, #tpu.memory_space<semaphore_mem>>
      tpu.wait_dma2 semaphore(%342 : memref<!tpu.dma_semaphore, #tpu.memory_space<semaphore_mem>>) src(%338 : memref<8x128xf32, #tpu.memory_space<any>>) dst(%340 : memref<8x128xf32, #tpu.memory_space<vmem>>)
    } else {
    }
    %c7_i32_215 = arith.constant 7 : i32
    %322 = arith.addi %0, %c7_i32_215 : i32
    %323 = arith.index_cast %322 : i32 to index
    %324 = memref.load %arg3[%323] : memref<8xf32, #tpu.memory_space<smem>>
    %c7 = arith.constant 7 : index
    %c0_216 = arith.constant 0 : index
    %c0_217 = arith.constant 0 : index
    %325 = vector.load %arg7[%c7, %c0_216, %c0_217] : memref<8x8x128xf32, #tpu.memory_space<vmem>>, vector<1x8x128xf32>
    %326 = vector.shape_cast %325 : vector<1x8x128xf32> to vector<8x128xf32>
    %c7_218 = arith.constant 7 : index
    %c0_219 = arith.constant 0 : index
    %c0_220 = arith.constant 0 : index
    %327 = vector.load %arg8[%c7_218, %c0_219, %c0_220] : memref<8x8x128xf32, #tpu.memory_space<vmem>>, vector<1x8x128xf32>
    %328 = vector.shape_cast %327 : vector<1x8x128xf32> to vector<8x128xf32>
    %329 = arith.subf %328, %326 : vector<8x128xf32>
    %330 = vector.broadcast %324 : f32 to vector<8x128xf32>
    %331 = arith.mulf %330, %329 : vector<8x128xf32>
    %332 = arith.addf %326, %331 : vector<8x128xf32>
    %333 = arith.select %319, %332, %326 : vector<8x128xf32>
    %c7_221 = arith.constant 7 : index
    %c0_222 = arith.constant 0 : index
    %c0_223 = arith.constant 0 : index
    %334 = vector.load %arg6[%c7_221, %c0_222, %c0_223] : memref<8x8x128xf32, #tpu.memory_space<vmem>>, vector<1x8x128xf32>
    %335 = vector.shape_cast %334 : vector<1x8x128xf32> to vector<8x128xf32>
    %336 = vector.shape_cast %333 : vector<8x128xf32> to vector<1x8x128xf32>
    tpu.vector_store %arg6[%c7_221, %c0_222, %c0_223], %336 {strides = array<i32>} : memref<8x8x128xf32, #tpu.memory_space<vmem>>, vector<1x8x128xf32>,
    return
  }
  func.func @transform_1(%arg0: i32, %arg1: memref<8xi32, #tpu.memory_space<smem>>, %arg2: memref<8xi32, #tpu.memory_space<smem>>, %arg3: memref<8xf32, #tpu.memory_space<smem>>, %arg4: memref<8xi32, #tpu.memory_space<smem>>) -> (i32, i32, i32) {
    %c0_i32 = arith.constant 0 : i32
    %c0_i32_0 = arith.constant 0 : i32
    %c0_i32_1 = arith.constant 0 : i32
    return %arg0, %c0_i32, %c0_i32_0 : i32, i32, i32
  }
}

</mosaic_0001>

<llo_original>
// kernel: tpu_custom_call.1
$region0: #{tpu_custom_call.1}
  #allocation0 [shape = 'u32[]', space=smem, size = 0x4, offset = 0x4, fixed_abs, tag = 'smem constant byte address 0x4 - core index']
  #allocation1 [shape = 'u32[72,128]{1,0:T(1,128)}', space=vmem, size = 0x9000, scoped, tag = 'internal scratch']
  #allocation2 [shape = 'f32[8,8,128]{2,1,0:T(8,128)}', space=vmem, size = 0x8000, scoped, tag = 'scratch operand']
  #allocation3 [shape = 'f32[8,8,128]{2,1,0:T(8,128)}', space=vmem, size = 0x8000, scoped, tag = 'scratch operand']
  #allocation4 [shape = 's32[8]{0}', space=sflag, size = 0x20, scoped, tag = 'scratch operand']
  #allocation5 [shape = 's32[8]{0}', space=sflag, size = 0x20, scoped, tag = 'scratch operand']
  #allocation6 [shape = 's32[1]{0}', space=sflag, size = 0x4, scoped, tag = 'scoped memory for tpu_custom_call.1']
  #allocation7 [shape = 'u8[512]{0}', space=smem, size = 0x200, scoped, tag = 'prefetched SMEM operand 0']
  #allocation8 [shape = 'u8[512]{0}', space=smem, size = 0x200, scoped, tag = 'prefetched SMEM operand 1']
  #allocation9 [shape = 'u8[512]{0}', space=smem, size = 0x200, scoped, tag = 'prefetched SMEM operand 2']
  #allocation10 [shape = 'u8[512]{0}', space=smem, size = 0x200, scoped, tag = 'prefetched SMEM operand 3']
  #allocation13 [shape = 's32[]', space=sflag, size = 0x4, offset = 0, fixed_abs, tag = 'sflag constant byte address 0x0 - dummy sync flag']
  #allocation14 [shape = 's32[]', space=sflag, size = 0x4, offset = 0, fixed_abs, tag = 'sflag constant byte address 0x0 - dummy sync flag']
  #allocation15 [shape = 'u32[]', space=smem, size = 0x4, offset = 0x44, fixed_abs, tag = 'smem constant byte address 0x44 - assertion arg 0']
  #allocation16 [shape = 'u32[]', space=smem, size = 0x4, offset = 0x48, fixed_abs, tag = 'smem constant byte address 0x48 - assertion arg 1']
  #allocation17 [shape = 's32[]', space=sflag, size = 0x4, offset = 0, fixed_abs, tag = 'sflag constant byte address 0x0 - dummy sync flag']
  #allocation18 [shape = 's32[]', space=sflag, size = 0x4, offset = 0, fixed_abs, tag = 'sflag constant byte address 0x0 - dummy sync flag']
  #allocation19 [shape = 's32[]', space=sflag, size = 0x4, offset = 0, fixed_abs, tag = 'sflag constant byte address 0x0 - dummy sync flag']
  #allocation20 [shape = 's32[]', space=sflag, size = 0x4, offset = 0, fixed_abs, tag = 'sflag constant byte address 0x0 - dummy sync flag']
  #allocation21 [shape = 's32[]', space=sflag, size = 0x4, offset = 0, fixed_abs, tag = 'sflag constant byte address 0x0 - dummy sync flag']
  #allocation22 [shape = 's32[]', space=sflag, size = 0x4, offset = 0, fixed_abs, tag = 'sflag constant byte address 0x0 - dummy sync flag']
  #allocation23 [shape = 's32[]', space=sflag, size = 0x4, offset = 0, fixed_abs, tag = 'sflag constant byte address 0x0 - dummy sync flag']
  #allocation24 [shape = 's32[]', space=sflag, size = 0x4, offset = 0, fixed_abs, tag = 'sflag constant byte address 0x0 - dummy sync flag']
  #allocation25 [shape = 's32[]', space=sflag, size = 0x4, offset = 0, fixed_abs, tag = 'sflag constant byte address 0x0 - dummy sync flag']
  #allocation26 [shape = 's32[]', space=sflag, size = 0x4, offset = 0, fixed_abs, tag = 'sflag constant byte address 0x0 - dummy sync flag']
  #allocation27 [shape = 's32[]', space=sflag, size = 0x4, offset = 0, fixed_abs, tag = 'sflag constant byte address 0x0 - dummy sync flag']
  #allocation28 [shape = 's32[]', space=sflag, size = 0x4, offset = 0, fixed_abs, tag = 'sflag constant byte address 0x0 - dummy sync flag']
  #allocation29 [shape = 's32[]', space=sflag, size = 0x4, offset = 0, fixed_abs, tag = 'sflag constant byte address 0x0 - dummy sync flag']
  #allocation30 [shape = 's32[]', space=sflag, size = 0x4, offset = 0, fixed_abs, tag = 'sflag constant byte address 0x0 - dummy sync flag']
  #allocation31 [shape = 's32[]', space=sflag, size = 0x4, offset = 0, fixed_abs, tag = 'sflag constant byte address 0x0 - dummy sync flag']
  #allocation32 [shape = 's32[]', space=sflag, size = 0x4, offset = 0, fixed_abs, tag = 'sflag constant byte address 0x0 - dummy sync flag']
  #allocation33 [shape = 's32[]', space=sflag, size = 0x4, offset = 0, fixed_abs, tag = 'sflag constant byte address 0x0 - dummy sync flag']
  #allocation34 [shape = 's32[]', space=sflag, size = 0x4, offset = 0, fixed_abs, tag = 'sflag constant byte address 0x0 - dummy sync flag']
  #allocation35 [shape = 's32[]', space=sflag, size = 0x4, offset = 0, fixed_abs, tag = 'sflag constant byte address 0x0 - dummy sync flag']
  #allocation36 [shape = 's32[]', space=sflag, size = 0x4, offset = 0, fixed_abs, tag = 'sflag constant byte address 0x0 - dummy sync flag']
  #allocation37 [shape = 's32[]', space=sflag, size = 0x4, offset = 0, fixed_abs, tag = 'sflag constant byte address 0x0 - dummy sync flag']
  #allocation38 [shape = 's32[]', space=sflag, size = 0x4, offset = 0, fixed_abs, tag = 'sflag constant byte address 0x0 - dummy sync flag']
  #allocation39 [shape = 's32[]', space=sflag, size = 0x4, offset = 0, fixed_abs, tag = 'sflag constant byte address 0x0 - dummy sync flag']
  #allocation40 [shape = 's32[]', space=sflag, size = 0x4, offset = 0, fixed_abs, tag = 'sflag constant byte address 0x0 - dummy sync flag']
  #allocation41 [shape = 's32[]', space=sflag, size = 0x4, offset = 0, fixed_abs, tag = 'sflag constant byte address 0x0 - dummy sync flag']
  #allocation42 [shape = 's32[]', space=sflag, size = 0x4, offset = 0, fixed_abs, tag = 'sflag constant byte address 0x0 - dummy sync flag']
  #allocation43 [shape = 's32[]', space=sflag, size = 0x4, offset = 0, fixed_abs, tag = 'sflag constant byte address 0x0 - dummy sync flag']
  #allocation44 [shape = 's32[]', space=sflag, size = 0x4, offset = 0, fixed_abs, tag = 'sflag constant byte address 0x0 - dummy sync flag']
  #allocation45 [shape = 's32[]', space=sflag, size = 0x4, offset = 0, fixed_abs, tag = 'sflag constant byte address 0x0 - dummy sync flag']
  #allocation46 [shape = 's32[]', space=sflag, size = 0x4, offset = 0, fixed_abs, tag = 'sflag constant byte address 0x0 - dummy sync flag']
  %s0 = inlined_call_operand.hbm [shape: s32[8], index: 0, kind: input, shape index: {}]
  %s1 = inlined_call_operand.hbm [shape: s32[8], index: 1, kind: input, shape index: {}]
  %s2 = inlined_call_operand.vmem [shape: f32[8], index: 2, kind: input, shape index: {}]
  %s3 = inlined_call_operand.vmem [shape: s32[8], index: 3, kind: input, shape index: {}]
  %s4 = inlined_call_operand.hbm [shape: f32[16,8,128], index: 4, kind: input, shape index: {}]
  %s5 = inlined_call_operand.hbm [shape: f32[8,8,128], index: 5, kind: output, shape index: {}]
  %s6 = sld [smem:[#allocation0]]
  $region138: #{tpu_custom_call.1} parent=0
    _
  %s8 = ssub.s32 1, %s6
  %s9 = scalar_select 0, %s8, %s6
  %s11 = sshll.u32 %s0, 4
  %s12 = int_to_ptr.hbm [resolvable:$true] %s11
  %14 = dma.hbm_to_smem %s12, 16, [#allocation7], [#allocation6]
  %s16 = sshll.u32 %s1, 4
  %s17 = int_to_ptr.hbm [resolvable:$true] %s16
  %19 = dma.hbm_to_smem %s17, 16, [#allocation8], [#allocation6]
  %s21 = sshll.u32 %s2, 4
  %s22 = int_to_ptr.vmem [resolvable:$true] %s21
  %24 = dma.vmem_to_smem %s22, 16, [#allocation9], [#allocation6]
  %s26 = sshll.u32 %s3, 4
  %s27 = int_to_ptr.vmem [resolvable:$true] %s26
  %29 = dma.vmem_to_smem %s27, 16, [#allocation10], [#allocation6]
  %31 = dma.done [#allocation6], 64
  %32 = sfence
  $region1: #{tpu_custom_call.1} parent=0
    #allocation11 [shape = 'u8[32768]{0}', space=vmem, size = 0x8000, scoped, tag = 'output window, operand 0, single buffered']
    #allocation12 [shape = 's32[1]{0}', space=sflag, size = 0x4, scoped, tag = 'scoped memory for tpu_custom_call.1']
    %33 = vsyncpa [#allocation12], 0
    %s34 = smul.u32 0, 8
    %s35 = sld [smem:[#allocation7 + %s34]]
    %s36 = smul.u32 %s35, 8
    %s37 = scalar_lea.hbm %s4, %s36
    // Predicated region
    $region2: #{tpu_custom_call.1} parent=1 // pred_check
      _
    $region3: #{tpu_custom_call.1} parent=1 // pred_check_branch
      %39 = sbr.rel target = $region5
    $region4: #{tpu_custom_call.1} parent=1 // pred_region
      %40 = sst [smem:[#allocation15]] [#allocation14]
      %41 = sst [smem:[#allocation16]] [#allocation13]
    $region5: #{tpu_custom_call.1} parent=1 // pred_fallthru
      _
    %43 = shalt.err (0)
    %s45 = sshll.u32 %s37, 4
    %s46 = int_to_ptr.hbm [resolvable:$true] %s45
    %s47 = sshll.u32 [#allocation2], 4
    %s48 = int_to_ptr.vmem [resolvable:$true] %s47
    %50 = dma.hbm_to_vmem [thread:$0]  %s46, 128, %s48, [#allocation4]
    %s51 = sld [smem:[#allocation10 + %s34]]
    %p52 = scmp.ne.s32.totalorder %s51, 0
    // Predicated region
    $region6: #{tpu_custom_call.1} parent=1 // pred_check
      %p53 = pneg %p52
    $region7: #{tpu_custom_call.1} parent=1 // pred_check_branch
      %55 = sbr.rel (%p53) target = $region9
    $region8: #{tpu_custom_call.1} parent=1 // pred_region
      %s56 = sld [smem:[#allocation8 + %s34]]
      %s57 = smul.u32 %s56, 8
      %s58 = scalar_lea.hbm %s4, %s57
      // Predicated region
      $region10: #{tpu_custom_call.1} parent=8 // pred_check
        _
      $region11: #{tpu_custom_call.1} parent=8 // pred_check_branch
        %60 = sbr.rel target = $region13
      $region12: #{tpu_custom_call.1} parent=8 // pred_region
        %61 = sst [smem:[#allocation15]] [#allocation18]
        %62 = sst [smem:[#allocation16]] [#allocation17]
      $region13: #{tpu_custom_call.1} parent=8 // pred_fallthru
        _
      %64 = shalt.err (0)
      %s66 = sshll.u32 %s58, 4
      %s67 = int_to_ptr.hbm [resolvable:$true] %s66
      %s68 = sshll.u32 [#allocation3], 4
      %s69 = int_to_ptr.vmem [resolvable:$true] %s68
      %71 = dma.hbm_to_vmem [thread:$0]  %s67, 128, %s69, [#allocation5]
    $region9: #{tpu_custom_call.1} parent=1 // pred_fallthru
      _
    %s72 = sadd.s32 %s34, 1
    %s73 = sld [smem:[#allocation7 + %s72]]
    %s74 = smul.u32 %s73, 8
    %s75 = scalar_lea.hbm %s4, %s74
    %s76 = scalar_lea.vmem [#allocation2], 8
    %s77 = scalar_lea.sflag [#allocation4], 1
    // Predicated region
    $region14: #{tpu_custom_call.1} parent=1 // pred_check
      _
    $region15: #{tpu_custom_call.1} parent=1 // pred_check_branch
      %79 = sbr.rel target = $region17
    $region16: #{tpu_custom_call.1} parent=1 // pred_region
      %80 = sst [smem:[#allocation15]] [#allocation20]
      %81 = sst [smem:[#allocation16]] [#allocation19]
    $region17: #{tpu_custom_call.1} parent=1 // pred_fallthru
      _
    %83 = shalt.err (0)
    %s85 = sshll.u32 %s75, 4
    %s86 = int_to_ptr.hbm [resolvable:$true] %s85
    %s87 = sshll.u32 %s76, 4
    %s88 = int_to_ptr.vmem [resolvable:$true] %s87
    %90 = dma.hbm_to_vmem [thread:$0]  %s86, 128, %s88, %s77
    %s91 = sld [smem:[#allocation10 + %s72]]
    %p92 = scmp.ne.s32.totalorder %s91, 0
    // Predicated region
    $region18: #{tpu_custom_call.1} parent=1 // pred_check
      %p93 = pneg %p92
    $region19: #{tpu_custom_call.1} parent=1 // pred_check_branch
      %95 = sbr.rel (%p93) target = $region21
    $region20: #{tpu_custom_call.1} parent=1 // pred_region
      %s96 = sld [smem:[#allocation8 + %s72]]
      %s97 = smul.u32 %s96, 8
      %s98 = scalar_lea.hbm %s4, %s97
      %s99 = scalar_lea.vmem [#allocation3], 8
      %s100 = scalar_lea.sflag [#allocation5], 1
      // Predicated region
      $region22: #{tpu_custom_call.1} parent=20 // pred_check
        _
      $region23: #{tpu_custom_call.1} parent=20 // pred_check_branch
        %102 = sbr.rel target = $region25
      $region24: #{tpu_custom_call.1} parent=20 // pred_region
        %103 = sst [smem:[#allocation15]] [#allocation22]
        %104 = sst [smem:[#allocation16]] [#allocation21]
      $region25: #{tpu_custom_call.1} parent=20 // pred_fallthru
        _
      %106 = shalt.err (0)
      %s108 = sshll.u32 %s98, 4
      %s109 = int_to_ptr.hbm [resolvable:$true] %s108
      %s110 = sshll.u32 %s99, 4
      %s111 = int_to_ptr.vmem [resolvable:$true] %s110
      %113 = dma.hbm_to_vmem [thread:$0]  %s109, 128, %s111, %s100
    $region21: #{tpu_custom_call.1} parent=1 // pred_fallthru
      _
    %s114 = sadd.s32 %s34, 2
    %s115 = sld [smem:[#allocation7 + %s114]]
    %s116 = smul.u32 %s115, 8
    %s117 = scalar_lea.hbm %s4, %s116
    %s118 = scalar_lea.vmem [#allocation2], 16
    %s119 = scalar_lea.sflag [#allocation4], 2
    // Predicated region
    $region26: #{tpu_custom_call.1} parent=1 // pred_check
      _
    $region27: #{tpu_custom_call.1} parent=1 // pred_check_branch
      %121 = sbr.rel target = $region29
    $region28: #{tpu_custom_call.1} parent=1 // pred_region
      %122 = sst [smem:[#allocation15]] [#allocation24]
      %123 = sst [smem:[#allocation16]] [#allocation23]
    $region29: #{tpu_custom_call.1} parent=1 // pred_fallthru
      _
    %125 = shalt.err (0)
    %s127 = sshll.u32 %s117, 4
    %s128 = int_to_ptr.hbm [resolvable:$true] %s127
    %s129 = sshll.u32 %s118, 4
    %s130 = int_to_ptr.vmem [resolvable:$true] %s129
    %132 = dma.hbm_to_vmem [thread:$0]  %s128, 128, %s130, %s119
    %s133 = sld [smem:[#allocation10 + %s114]]
    %p134 = scmp.ne.s32.totalorder %s133, 0
    // Predicated region
    $region30: #{tpu_custom_call.1} parent=1 // pred_check
      %p135 = pneg %p134
    $region31: #{tpu_custom_call.1} parent=1 // pred_check_branch
      %137 = sbr.rel (%p135) target = $region33
    $region32: #{tpu_custom_call.1} parent=1 // pred_region
      %s138 = sld [smem:[#allocation8 + %s114]]
      %s139 = smul.u32 %s138, 8
      %s140 = scalar_lea.hbm %s4, %s139
      %s141 = scalar_lea.vmem [#allocation3], 16
      %s142 = scalar_lea.sflag [#allocation5], 2
      // Predicated region
      $region34: #{tpu_custom_call.1} parent=32 // pred_check
        _
      $region35: #{tpu_custom_call.1} parent=32 // pred_check_branch
        %144 = sbr.rel target = $region37
      $region36: #{tpu_custom_call.1} parent=32 // pred_region
        %145 = sst [smem:[#allocation15]] [#allocation26]
        %146 = sst [smem:[#allocation16]] [#allocation25]
      $region37: #{tpu_custom_call.1} parent=32 // pred_fallthru
        _
      %148 = shalt.err (0)
      %s150 = sshll.u32 %s140, 4
      %s151 = int_to_ptr.hbm [resolvable:$true] %s150
      %s152 = sshll.u32 %s141, 4
      %s153 = int_to_ptr.vmem [resolvable:$true] %s152
      %155 = dma.hbm_to_vmem [thread:$0]  %s151, 128, %s153, %s142
    $region33: #{tpu_custom_call.1} parent=1 // pred_fallthru
      _
    %s156 = sadd.s32 %s34, 3
    %s157 = sld [smem:[#allocation7 + %s156]]
    %s158 = smul.u32 %s157, 8
    %s159 = scalar_lea.hbm %s4, %s158
    %s160 = scalar_lea.vmem [#allocation2], 24
    %s161 = scalar_lea.sflag [#allocation4], 3
    // Predicated region
    $region38: #{tpu_custom_call.1} parent=1 // pred_check
      _
    $region39: #{tpu_custom_call.1} parent=1 // pred_check_branch
      %163 = sbr.rel target = $region41
    $region40: #{tpu_custom_call.1} parent=1 // pred_region
      %164 = sst [smem:[#allocation15]] [#allocation28]
      %165 = sst [smem:[#allocation16]] [#allocation27]
    $region41: #{tpu_custom_call.1} parent=1 // pred_fallthru
      _
    %167 = shalt.err (0)
    %s169 = sshll.u32 %s159, 4
    %s170 = int_to_ptr.hbm [resolvable:$true] %s169
    %s171 = sshll.u32 %s160, 4
    %s172 = int_to_ptr.vmem [resolvable:$true] %s171
    %174 = dma.hbm_to_vmem [thread:$0]  %s170, 128, %s172, %s161
    %s175 = sld [smem:[#allocation10 + %s156]]
    %p176 = scmp.ne.s32.totalorder %s175, 0
    // Predicated region
    $region42: #{tpu_custom_call.1} parent=1 // pred_check
      %p177 = pneg %p176
    $region43: #{tpu_custom_call.1} parent=1 // pred_check_branch
      %179 = sbr.rel (%p177) target = $region45
    $region44: #{tpu_custom_call.1} parent=1 // pred_region
      %s180 = sld [smem:[#allocation8 + %s156]]
      %s181 = smul.u32 %s180, 8
      %s182 = scalar_lea.hbm %s4, %s181
      %s183 = scalar_lea.vmem [#allocation3], 24
      %s184 = scalar_lea.sflag [#allocation5], 3
      // Predicated region
      $region46: #{tpu_custom_call.1} parent=44 // pred_check
        _
      $region47: #{tpu_custom_call.1} parent=44 // pred_check_branch
        %186 = sbr.rel target = $region49
      $region48: #{tpu_custom_call.1} parent=44 // pred_region
        %187 = sst [smem:[#allocation15]] [#allocation30]
        %188 = sst [smem:[#allocation16]] [#allocation29]
      $region49: #{tpu_custom_call.1} parent=44 // pred_fallthru
        _
      %190 = shalt.err (0)
      %s192 = sshll.u32 %s182, 4
      %s193 = int_to_ptr.hbm [resolvable:$true] %s192
      %s194 = sshll.u32 %s183, 4
      %s195 = int_to_ptr.vmem [resolvable:$true] %s194
      %197 = dma.hbm_to_vmem [thread:$0]  %s193, 128, %s195, %s184
    $region45: #{tpu_custom_call.1} parent=1 // pred_fallthru
      _
    %s198 = sadd.s32 %s34, 4
    %s199 = sld [smem:[#allocation7 + %s198]]
    %s200 = smul.u32 %s199, 8
    %s201 = scalar_lea.hbm %s4, %s200
    %s202 = scalar_lea.vmem [#allocation2], 32
    %s203 = scalar_lea.sflag [#allocation4], 4
    // Predicated region
    $region50: #{tpu_custom_call.1} parent=1 // pred_check
      _
    $region51: #{tpu_custom_call.1} parent=1 // pred_check_branch
      %205 = sbr.rel target = $region53
    $region52: #{tpu_custom_call.1} parent=1 // pred_region
      %206 = sst [smem:[#allocation15]] [#allocation32]
      %207 = sst [smem:[#allocation16]] [#allocation31]
    $region53: #{tpu_custom_call.1} parent=1 // pred_fallthru
      _
    %209 = shalt.err (0)
    %s211 = sshll.u32 %s201, 4
    %s212 = int_to_ptr.hbm [resolvable:$true] %s211
    %s213 = sshll.u32 %s202, 4
    %s214 = int_to_ptr.vmem [resolvable:$true] %s213
    %216 = dma.hbm_to_vmem [thread:$0]  %s212, 128, %s214, %s203
    %s217 = sld [smem:[#allocation10 + %s198]]
    %p218 = scmp.ne.s32.totalorder %s217, 0
    // Predicated region
    $region54: #{tpu_custom_call.1} parent=1 // pred_check
      %p219 = pneg %p218
    $region55: #{tpu_custom_call.1} parent=1 // pred_check_branch
      %221 = sbr.rel (%p219) target = $region57
    $region56: #{tpu_custom_call.1} parent=1 // pred_region
      %s222 = sld [smem:[#allocation8 + %s198]]
      %s223 = smul.u32 %s222, 8
      %s224 = scalar_lea.hbm %s4, %s223
      %s225 = scalar_lea.vmem [#allocation3], 32
      %s226 = scalar_lea.sflag [#allocation5], 4
      // Predicated region
      $region58: #{tpu_custom_call.1} parent=56 // pred_check
        _
      $region59: #{tpu_custom_call.1} parent=56 // pred_check_branch
        %228 = sbr.rel target = $region61
      $region60: #{tpu_custom_call.1} parent=56 // pred_region
        %229 = sst [smem:[#allocation15]] [#allocation34]
        %230 = sst [smem:[#allocation16]] [#allocation33]
      $region61: #{tpu_custom_call.1} parent=56 // pred_fallthru
        _
      %232 = shalt.err (0)
      %s234 = sshll.u32 %s224, 4
      %s235 = int_to_ptr.hbm [resolvable:$true] %s234
      %s236 = sshll.u32 %s225, 4
      %s237 = int_to_ptr.vmem [resolvable:$true] %s236
      %239 = dma.hbm_to_vmem [thread:$0]  %s235, 128, %s237, %s226
    $region57: #{tpu_custom_call.1} parent=1 // pred_fallthru
      _
    %s240 = sadd.s32 %s34, 5
    %s241 = sld [smem:[#allocation7 + %s240]]
    %s242 = smul.u32 %s241, 8
    %s243 = scalar_lea.hbm %s4, %s242
    %s244 = scalar_lea.vmem [#allocation2], 40
    %s245 = scalar_lea.sflag [#allocation4], 5
    // Predicated region
    $region62: #{tpu_custom_call.1} parent=1 // pred_check
      _
    $region63: #{tpu_custom_call.1} parent=1 // pred_check_branch
      %247 = sbr.rel target = $region65
    $region64: #{tpu_custom_call.1} parent=1 // pred_region
      %248 = sst [smem:[#allocation15]] [#allocation36]
      %249 = sst [smem:[#allocation16]] [#allocation35]
    $region65: #{tpu_custom_call.1} parent=1 // pred_fallthru
      _
    %251 = shalt.err (0)
    %s253 = sshll.u32 %s243, 4
    %s254 = int_to_ptr.hbm [resolvable:$true] %s253
    %s255 = sshll.u32 %s244, 4
    %s256 = int_to_ptr.vmem [resolvable:$true] %s255
    %258 = dma.hbm_to_vmem [thread:$0]  %s254, 128, %s256, %s245
    %s259 = sld [smem:[#allocation10 + %s240]]
    %p260 = scmp.ne.s32.totalorder %s259, 0
    // Predicated region
    $region66: #{tpu_custom_call.1} parent=1 // pred_check
      %p261 = pneg %p260
    $region67: #{tpu_custom_call.1} parent=1 // pred_check_branch
      %263 = sbr.rel (%p261) target = $region69
    $region68: #{tpu_custom_call.1} parent=1 // pred_region
      %s264 = sld [smem:[#allocation8 + %s240]]
      %s265 = smul.u32 %s264, 8
      %s266 = scalar_lea.hbm %s4, %s265
      %s267 = scalar_lea.vmem [#allocation3], 40
      %s268 = scalar_lea.sflag [#allocation5], 5
      // Predicated region
      $region70: #{tpu_custom_call.1} parent=68 // pred_check
        _
      $region71: #{tpu_custom_call.1} parent=68 // pred_check_branch
        %270 = sbr.rel target = $region73
      $region72: #{tpu_custom_call.1} parent=68 // pred_region
        %271 = sst [smem:[#allocation15]] [#allocation38]
        %272 = sst [smem:[#allocation16]] [#allocation37]
      $region73: #{tpu_custom_call.1} parent=68 // pred_fallthru
        _
      %274 = shalt.err (0)
      %s276 = sshll.u32 %s266, 4
      %s277 = int_to_ptr.hbm [resolvable:$true] %s276
      %s278 = sshll.u32 %s267, 4
      %s279 = int_to_ptr.vmem [resolvable:$true] %s278
      %281 = dma.hbm_to_vmem [thread:$0]  %s277, 128, %s279, %s268
    $region69: #{tpu_custom_call.1} parent=1 // pred_fallthru
      _
    %s282 = sadd.s32 %s34, 6
    %s283 = sld [smem:[#allocation7 + %s282]]
    %s284 = smul.u32 %s283, 8
    %s285 = scalar_lea.hbm %s4, %s284
    %s286 = scalar_lea.vmem [#allocation2], 48
    %s287 = scalar_lea.sflag [#allocation4], 6
    // Predicated region
    $region74: #{tpu_custom_call.1} parent=1 // pred_check
      _
    $region75: #{tpu_custom_call.1} parent=1 // pred_check_branch
      %289 = sbr.rel target = $region77
    $region76: #{tpu_custom_call.1} parent=1 // pred_region
      %290 = sst [smem:[#allocation15]] [#allocation40]
      %291 = sst [smem:[#allocation16]] [#allocation39]
    $region77: #{tpu_custom_call.1} parent=1 // pred_fallthru
      _
    %293 = shalt.err (0)
    %s295 = sshll.u32 %s285, 4
    %s296 = int_to_ptr.hbm [resolvable:$true] %s295
    %s297 = sshll.u32 %s286, 4
    %s298 = int_to_ptr.vmem [resolvable:$true] %s297
    %300 = dma.hbm_to_vmem [thread:$0]  %s296, 128, %s298, %s287
    %s301 = sld [smem:[#allocation10 + %s282]]
    %p302 = scmp.ne.s32.totalorder %s301, 0
    // Predicated region
    $region78: #{tpu_custom_call.1} parent=1 // pred_check
      %p303 = pneg %p302
    $region79: #{tpu_custom_call.1} parent=1 // pred_check_branch
      %305 = sbr.rel (%p303) target = $region81
    $region80: #{tpu_custom_call.1} parent=1 // pred_region
      %s306 = sld [smem:[#allocation8 + %s282]]
      %s307 = smul.u32 %s306, 8
      %s308 = scalar_lea.hbm %s4, %s307
      %s309 = scalar_lea.vmem [#allocation3], 48
      %s310 = scalar_lea.sflag [#allocation5], 6
      // Predicated region
      $region82: #{tpu_custom_call.1} parent=80 // pred_check
        _
      $region83: #{tpu_custom_call.1} parent=80 // pred_check_branch
        %312 = sbr.rel target = $region85
      $region84: #{tpu_custom_call.1} parent=80 // pred_region
        %313 = sst [smem:[#allocation15]] [#allocation42]
        %314 = sst [smem:[#allocation16]] [#allocation41]
      $region85: #{tpu_custom_call.1} parent=80 // pred_fallthru
        _
      %316 = shalt.err (0)
      %s318 = sshll.u32 %s308, 4
      %s319 = int_to_ptr.hbm [resolvable:$true] %s318
      %s320 = sshll.u32 %s309, 4
      %s321 = int_to_ptr.vmem [resolvable:$true] %s320
      %323 = dma.hbm_to_vmem [thread:$0]  %s319, 128, %s321, %s310
    $region81: #{tpu_custom_call.1} parent=1 // pred_fallthru
      _
    %s324 = sadd.s32 %s34, 7
    %s325 = sld [smem:[#allocation7 + %s324]]
    %s326 = smul.u32 %s325, 8
    %s327 = scalar_lea.hbm %s4, %s326
    %s328 = scalar_lea.vmem [#allocation2], 56
    %s329 = scalar_lea.sflag [#allocation4], 7
    // Predicated region
    $region86: #{tpu_custom_call.1} parent=1 // pred_check
      _
    $region87: #{tpu_custom_call.1} parent=1 // pred_check_branch
      %331 = sbr.rel target = $region89
    $region88: #{tpu_custom_call.1} parent=1 // pred_region
      %332 = sst [smem:[#allocation15]] [#allocation44]
      %333 = sst [smem:[#allocation16]] [#allocation43]
    $region89: #{tpu_custom_call.1} parent=1 // pred_fallthru
      _
    %335 = shalt.err (0)
    %s337 = sshll.u32 %s327, 4
    %s338 = int_to_ptr.hbm [resolvable:$true] %s337
    %s339 = sshll.u32 %s328, 4
    %s340 = int_to_ptr.vmem [resolvable:$true] %s339
    %342 = dma.hbm_to_vmem [thread:$0]  %s338, 128, %s340, %s329
    %s343 = sld [smem:[#allocation10 + %s324]]
    %p344 = scmp.ne.s32.totalorder %s343, 0
    // Predicated region
    $region90: #{tpu_custom_call.1} parent=1 // pred_check
      %p345 = pneg %p344
    $region91: #{tpu_custom_call.1} parent=1 // pred_check_branch
      %347 = sbr.rel (%p345) target = $region93
    $region92: #{tpu_custom_call.1} parent=1 // pred_region
      %s348 = sld [smem:[#allocation8 + %s324]]
      %s349 = smul.u32 %s348, 8
      %s350 = scalar_lea.hbm %s4, %s349
      %s351 = scalar_lea.vmem [#allocation3], 56
      %s352 = scalar_lea.sflag [#allocation5], 7
      // Predicated region
      $region94: #{tpu_custom_call.1} parent=92 // pred_check
        _
      $region95: #{tpu_custom_call.1} parent=92 // pred_check_branch
        %354 = sbr.rel target = $region97
      $region96: #{tpu_custom_call.1} parent=92 // pred_region
        %355 = sst [smem:[#allocation15]] [#allocation46]
        %356 = sst [smem:[#allocation16]] [#allocation45]
      $region97: #{tpu_custom_call.1} parent=92 // pred_fallthru
        _
      %358 = shalt.err (0)
      %s360 = sshll.u32 %s350, 4
      %s361 = int_to_ptr.hbm [resolvable:$true] %s360
      %s362 = sshll.u32 %s351, 4
      %s363 = int_to_ptr.vmem [resolvable:$true] %s362
      %365 = dma.hbm_to_vmem [thread:$0]  %s361, 128, %s363, %s352
    $region93: #{tpu_custom_call.1} parent=1 // pred_fallthru
      _
    %s366 = smul.u32 8, 1
    %s367 = sshll.u32 %s366, 4
    %368 = dma.done [#allocation4], %s367
    %s369 = sld [smem:[#allocation10 + %s34]]
    %p370 = scmp.ne.s32.totalorder %s369, 0
    // Predicated region
    $region98: #{tpu_custom_call.1} parent=1 // pred_check
      %p371 = pneg %p370
    $region99: #{tpu_custom_call.1} parent=1 // pred_check_branch
      %373 = sbr.rel (%p371) target = $region101
    $region100: #{tpu_custom_call.1} parent=1 // pred_region
      %s374 = sshll.u32 %s366, 4
      %375 = dma.done [#allocation5], %s374
    $region101: #{tpu_custom_call.1} parent=1 // pred_fallthru
      _
    %s376 = sld [smem:[#allocation9 + %s34]]
    %v377 = vld [vmem:[#allocation2] sm:$0xff]
    %v378 = vld [vmem:[#allocation3] sm:$0xff]
    %v379 = vsub.f32 %v378, %v377
    %v380 = vstv %s376
    %v381 = vmul.f32 %v380, %v379
    %v382 = vadd.f32 %v377, %v381
    %s383 = scalar_select %p370, 1, 0
    %v384 = vstv %s383
    %vm385 = vcmp.eq.s32.totalorder %v384, 1
    %v386 = vsel %vm385, %v382, %v377
    %387 = vst [vmem:[#allocation11] sm:$0xff] %v386
    %s388 = sshll.u32 %s366, 4
    %389 = dma.done %s77, %s388
    %s390 = sld [smem:[#allocation10 + %s72]]
    %p391 = scmp.ne.s32.totalorder %s390, 0
    // Predicated region
    $region102: #{tpu_custom_call.1} parent=1 // pred_check
      %p392 = pneg %p391
    $region103: #{tpu_custom_call.1} parent=1 // pred_check_branch
      %394 = sbr.rel (%p392) target = $region105
    $region104: #{tpu_custom_call.1} parent=1 // pred_region
      %s395 = scalar_lea.sflag [#allocation5], 1
      %s396 = sshll.u32 %s366, 4
      %397 = dma.done %s395, %s396
    $region105: #{tpu_custom_call.1} parent=1 // pred_fallthru
      _
    %s398 = sld [smem:[#allocation9 + %s72]]
    %v399 = vld [vmem:[%s76] sm:$0xff]
    %s400 = scalar_lea.vmem [#allocation3], 8
    %v401 = vld [vmem:[%s400] sm:$0xff]
    %v402 = vsub.f32 %v401, %v399
    %v403 = vstv %s398
    %v404 = vmul.f32 %v403, %v402
    %v405 = vadd.f32 %v399, %v404
    %s406 = scalar_select %p391, 1, 0
    %v407 = vstv %s406
    %vm408 = vcmp.eq.s32.totalorder %v407, 1
    %v409 = vsel %vm408, %v405, %v399
    %s410 = scalar_lea.vmem [#allocation11], 8
    %411 = vst [vmem:[%s410] sm:$0xff] %v409
    %s412 = sshll.u32 %s366, 4
    %413 = dma.done %s119, %s412
    %s414 = sld [smem:[#allocation10 + %s114]]
    %p415 = scmp.ne.s32.totalorder %s414, 0
    // Predicated region
    $region106: #{tpu_custom_call.1} parent=1 // pred_check
      %p416 = pneg %p415
    $region107: #{tpu_custom_call.1} parent=1 // pred_check_branch
      %418 = sbr.rel (%p416) target = $region109
    $region108: #{tpu_custom_call.1} parent=1 // pred_region
      %s419 = scalar_lea.sflag [#allocation5], 2
      %s420 = sshll.u32 %s366, 4
      %421 = dma.done %s419, %s420
    $region109: #{tpu_custom_call.1} parent=1 // pred_fallthru
      _
    %s422 = sld [smem:[#allocation9 + %s114]]
    %v423 = vld [vmem:[%s118] sm:$0xff]
    %s424 = scalar_lea.vmem [#allocation3], 16
    %v425 = vld [vmem:[%s424] sm:$0xff]
    %v426 = vsub.f32 %v425, %v423
    %v427 = vstv %s422
    %v428 = vmul.f32 %v427, %v426
    %v429 = vadd.f32 %v423, %v428
    %s430 = scalar_select %p415, 1, 0
    %v431 = vstv %s430
    %vm432 = vcmp.eq.s32.totalorder %v431, 1
    %v433 = vsel %vm432, %v429, %v423
    %s434 = scalar_lea.vmem [#allocation11], 16
    %435 = vst [vmem:[%s434] sm:$0xff] %v433
    %s436 = sshll.u32 %s366, 4
    %437 = dma.done %s161, %s436
    %s438 = sld [smem:[#allocation10 + %s156]]
    %p439 = scmp.ne.s32.totalorder %s438, 0
    // Predicated region
    $region110: #{tpu_custom_call.1} parent=1 // pred_check
      %p440 = pneg %p439
    $region111: #{tpu_custom_call.1} parent=1 // pred_check_branch
      %442 = sbr.rel (%p440) target = $region113
    $region112: #{tpu_custom_call.1} parent=1 // pred_region
      %s443 = scalar_lea.sflag [#allocation5], 3
      %s444 = sshll.u32 %s366, 4
      %445 = dma.done %s443, %s444
    $region113: #{tpu_custom_call.1} parent=1 // pred_fallthru
      _
    %s446 = sld [smem:[#allocation9 + %s156]]
    %v447 = vld [vmem:[%s160] sm:$0xff]
    %s448 = scalar_lea.vmem [#allocation3], 24
    %v449 = vld [vmem:[%s448] sm:$0xff]
    %v450 = vsub.f32 %v449, %v447
    %v451 = vstv %s446
    %v452 = vmul.f32 %v451, %v450
    %v453 = vadd.f32 %v447, %v452
    %s454 = scalar_select %p439, 1, 0
    %v455 = vstv %s454
    %vm456 = vcmp.eq.s32.totalorder %v455, 1
    %v457 = vsel %vm456, %v453, %v447
    %s458 = scalar_lea.vmem [#allocation11], 24
    %459 = vst [vmem:[%s458] sm:$0xff] %v457
    %s460 = sshll.u32 %s366, 4
    %461 = dma.done %s203, %s460
    %s462 = sld [smem:[#allocation10 + %s198]]
    %p463 = scmp.ne.s32.totalorder %s462, 0
    // Predicated region
    $region114: #{tpu_custom_call.1} parent=1 // pred_check
      %p464 = pneg %p463
    $region115: #{tpu_custom_call.1} parent=1 // pred_check_branch
      %466 = sbr.rel (%p464) target = $region117
    $region116: #{tpu_custom_call.1} parent=1 // pred_region
      %s467 = scalar_lea.sflag [#allocation5], 4
      %s468 = sshll.u32 %s366, 4
      %469 = dma.done %s467, %s468
    $region117: #{tpu_custom_call.1} parent=1 // pred_fallthru
      _
    %s470 = sld [smem:[#allocation9 + %s198]]
    %v471 = vld [vmem:[%s202] sm:$0xff]
    %s472 = scalar_lea.vmem [#allocation3], 32
    %v473 = vld [vmem:[%s472] sm:$0xff]
    %v474 = vsub.f32 %v473, %v471
    %v475 = vstv %s470
    %v476 = vmul.f32 %v475, %v474
    %v477 = vadd.f32 %v471, %v476
    %s478 = scalar_select %p463, 1, 0
    %v479 = vstv %s478
    %vm480 = vcmp.eq.s32.totalorder %v479, 1
    %v481 = vsel %vm480, %v477, %v471
    %s482 = scalar_lea.vmem [#allocation11], 32
    %483 = vst [vmem:[%s482] sm:$0xff] %v481
    %s484 = sshll.u32 %s366, 4
    %485 = dma.done %s245, %s484
    %s486 = sld [smem:[#allocation10 + %s240]]
    %p487 = scmp.ne.s32.totalorder %s486, 0
    // Predicated region
    $region118: #{tpu_custom_call.1} parent=1 // pred_check
      %p488 = pneg %p487
    $region119: #{tpu_custom_call.1} parent=1 // pred_check_branch
      %490 = sbr.rel (%p488) target = $region121
    $region120: #{tpu_custom_call.1} parent=1 // pred_region
      %s491 = scalar_lea.sflag [#allocation5], 5
      %s492 = sshll.u32 %s366, 4
      %493 = dma.done %s491, %s492
    $region121: #{tpu_custom_call.1} parent=1 // pred_fallthru
      _
    %s494 = sld [smem:[#allocation9 + %s240]]
    %v495 = vld [vmem:[%s244] sm:$0xff]
    %s496 = scalar_lea.vmem [#allocation3], 40
    %v497 = vld [vmem:[%s496] sm:$0xff]
    %v498 = vsub.f32 %v497, %v495
    %v499 = vstv %s494
    %v500 = vmul.f32 %v499, %v498
    %v501 = vadd.f32 %v495, %v500
    %s502 = scalar_select %p487, 1, 0
    %v503 = vstv %s502
    %vm504 = vcmp.eq.s32.totalorder %v503, 1
    %v505 = vsel %vm504, %v501, %v495
    %s506 = scalar_lea.vmem [#allocation11], 40
    %507 = vst [vmem:[%s506] sm:$0xff] %v505
    %s508 = sshll.u32 %s366, 4
    %509 = dma.done %s287, %s508
    %s510 = sld [smem:[#allocation10 + %s282]]
    %p511 = scmp.ne.s32.totalorder %s510, 0
    // Predicated region
    $region122: #{tpu_custom_call.1} parent=1 // pred_check
      %p512 = pneg %p511
    $region123: #{tpu_custom_call.1} parent=1 // pred_check_branch
      %514 = sbr.rel (%p512) target = $region125
    $region124: #{tpu_custom_call.1} parent=1 // pred_region
      %s515 = scalar_lea.sflag [#allocation5], 6
      %s516 = sshll.u32 %s366, 4
      %517 = dma.done %s515, %s516
    $region125: #{tpu_custom_call.1} parent=1 // pred_fallthru
      _
    %s518 = sld [smem:[#allocation9 + %s282]]
    %v519 = vld [vmem:[%s286] sm:$0xff]
    %s520 = scalar_lea.vmem [#allocation3], 48
    %v521 = vld [vmem:[%s520] sm:$0xff]
    %v522 = vsub.f32 %v521, %v519
    %v523 = vstv %s518
    %v524 = vmul.f32 %v523, %v522
    %v525 = vadd.f32 %v519, %v524
    %s526 = scalar_select %p511, 1, 0
    %v527 = vstv %s526
    %vm528 = vcmp.eq.s32.totalorder %v527, 1
    %v529 = vsel %vm528, %v525, %v519
    %s530 = scalar_lea.vmem [#allocation11], 48
    %531 = vst [vmem:[%s530] sm:$0xff] %v529
    %s532 = sshll.u32 %s366, 4
    %533 = dma.done %s329, %s532
    %s534 = sld [smem:[#allocation10 + %s324]]
    %p535 = scmp.ne.s32.totalorder %s534, 0
    // Predicated region
    $region126: #{tpu_custom_call.1} parent=1 // pred_check
      %p536 = pneg %p535
    $region127: #{tpu_custom_call.1} parent=1 // pred_check_branch
      %538 = sbr.rel (%p536) target = $region129
    $region128: #{tpu_custom_call.1} parent=1 // pred_region
      %s539 = scalar_lea.sflag [#allocation5], 7
      %s540 = sshll.u32 %s366, 4
      %541 = dma.done %s539, %s540
    $region129: #{tpu_custom_call.1} parent=1 // pred_fallthru
      _
    %s542 = sld [smem:[#allocation9 + %s324]]
    %v543 = vld [vmem:[%s328] sm:$0xff]
    %s544 = scalar_lea.vmem [#allocation3], 56
    %v545 = vld [vmem:[%s544] sm:$0xff]
    %v546 = vsub.f32 %v545, %v543
    %v547 = vstv %s542
    %v548 = vmul.f32 %v547, %v546
    %v549 = vadd.f32 %v543, %v548
    %s550 = scalar_select %p535, 1, 0
    %v551 = vstv %s550
    %vm552 = vcmp.eq.s32.totalorder %v551, 1
    %v553 = vsel %vm552, %v549, %v543
    %s554 = scalar_lea.vmem [#allocation11], 56
    %555 = vst [vmem:[%s554] sm:$0xff] %v553
    // Predicated region
    $region130: #{tpu_custom_call.1} parent=1 // pred_check
      _
    $region131: #{tpu_custom_call.1} parent=1 // pred_check_branch
      %557 = sbr.rel (0) target = $region133
    $region132: #{tpu_custom_call.1} parent=1 // pred_region
      %559 = vsyncadd [#allocation12], 0
      %s560 = sshll.u32 [#allocation11], 4
      %s561 = int_to_ptr.vmem [resolvable:$true] %s560
      %s562 = sshll.u32 %s5, 4
      %s563 = int_to_ptr.hbm [resolvable:$true] %s562
      %568 = dma.vmem_to_hbm [thread:$0]  %s561, 1024, %s563, [#allocation12], 128, 128, 8
    $region133: #{tpu_custom_call.1} parent=1 // pred_fallthru
      _
    // Predicated region
    $region134: #{tpu_custom_call.1} parent=1 // pred_check
      _
    $region135: #{tpu_custom_call.1} parent=1 // pred_check_branch
      %570 = sbr.rel (0) target = $region137
    $region136: #{tpu_custom_call.1} parent=1 // pred_region
      %572 = dma.done [#allocation12], 1024
    $region137: #{tpu_custom_call.1} parent=1 // pred_fallthru
      _
    %573 = vsyncpa [#allocation12], 1
  %574 = vsyncmov [#allocation4]
  %s575 = vpop.sfrf %574
  %p576 = scmp.eq.s32.totalorder %s575, 0
  %p577 = pneg %p576
  %579 = shalt.err (%p577)
  %s580 = scalar_lea.sflag [#allocation4], 1
  %581 = vsyncmov %s580
  %s582 = vpop.sfrf %581
  %p583 = scmp.eq.s32.totalorder %s582, 0
  %p584 = pneg %p583
  %586 = shalt.err (%p584)
  %s587 = scalar_lea.sflag [#allocation4], 2
  %588 = vsyncmov %s587
  %s589 = vpop.sfrf %588
  %p590 = scmp.eq.s32.totalorder %s589, 0
  %p591 = pneg %p590
  %593 = shalt.err (%p591)
  %s594 = scalar_lea.sflag [#allocation4], 3
  %595 = vsyncmov %s594
  %s596 = vpop.sfrf %595
  %p597 = scmp.eq.s32.totalorder %s596, 0
  %p598 = pneg %p597
  %600 = shalt.err (%p598)
  %s601 = scalar_lea.sflag [#allocation4], 4
  %602 = vsyncmov %s601
  %s603 = vpop.sfrf %602
  %p604 = scmp.eq.s32.totalorder %s603, 0
  %p605 = pneg %p604
  %607 = shalt.err (%p605)
  %s608 = scalar_lea.sflag [#allocation4], 5
  %609 = vsyncmov %s608
  %s610 = vpop.sfrf %609
  %p611 = scmp.eq.s32.totalorder %s610, 0
  %p612 = pneg %p611
  %614 = shalt.err (%p612)
  %s615 = scalar_lea.sflag [#allocation4], 6
  %616 = vsyncmov %s615
  %s617 = vpop.sfrf %616
  %p618 = scmp.eq.s32.totalorder %s617, 0
  %p619 = pneg %p618
  %621 = shalt.err (%p619)
  %s622 = scalar_lea.sflag [#allocation4], 7
  %623 = vsyncmov %s622
  %s624 = vpop.sfrf %623
  %p625 = scmp.eq.s32.totalorder %s624, 0
  %p626 = pneg %p625
  %628 = shalt.err (%p626)
  %629 = vsyncmov [#allocation5]
  %s630 = vpop.sfrf %629
  %p631 = scmp.eq.s32.totalorder %s630, 0
  %p632 = pneg %p631
  %634 = shalt.err (%p632)
  %s635 = scalar_lea.sflag [#allocation5], 1
  %636 = vsyncmov %s635
  %s637 = vpop.sfrf %636
  %p638 = scmp.eq.s32.totalorder %s637, 0
  %p639 = pneg %p638
  %641 = shalt.err (%p639)
  %s642 = scalar_lea.sflag [#allocation5], 2
  %643 = vsyncmov %s642
  %s644 = vpop.sfrf %643
  %p645 = scmp.eq.s32.totalorder %s644, 0
  %p646 = pneg %p645
  %648 = shalt.err (%p646)
  %s649 = scalar_lea.sflag [#allocation5], 3
  %650 = vsyncmov %s649
  %s651 = vpop.sfrf %650
  %p652 = scmp.eq.s32.totalorder %s651, 0
  %p653 = pneg %p652
  %655 = shalt.err (%p653)
  %s656 = scalar_lea.sflag [#allocation5], 4
  %657 = vsyncmov %s656
  %s658 = vpop.sfrf %657
  %p659 = scmp.eq.s32.totalorder %s658, 0
  %p660 = pneg %p659
  %662 = shalt.err (%p660)
  %s663 = scalar_lea.sflag [#allocation5], 5
  %664 = vsyncmov %s663
  %s665 = vpop.sfrf %664
  %p666 = scmp.eq.s32.totalorder %s665, 0
  %p667 = pneg %p666
  %669 = shalt.err (%p667)
  %s670 = scalar_lea.sflag [#allocation5], 6
  %671 = vsyncmov %s670
  %s672 = vpop.sfrf %671
  %p673 = scmp.eq.s32.totalorder %s672, 0
  %p674 = pneg %p673
  %676 = shalt.err (%p674)
  %s677 = scalar_lea.sflag [#allocation5], 7
  %678 = vsyncmov %s677
  %s679 = vpop.sfrf %678
  %p680 = scmp.eq.s32.totalorder %s679, 0
  %p681 = pneg %p680
  %683 = shalt.err (%p681)

</llo_original>
